<compile_context>
chip_gen: v6e
topology: v6e:2x2x1
jax: 0.10.0
libtpu: 0.0.40
codegen_flags: <defaults>
</compile_context>

<pallas_src>
import functools
import math

import jax
import jax.numpy as jnp
from jax.experimental import pallas as pl
from jax.experimental.pallas import tpu as pltpu


# [R7] Explicit VMEM budget. At the default tiles the per-kernel residency is a few MiB
# (e.g. flash_mha at block_q=block_k=256, d_out=256: ~2.5 MiB including double buffers and
# scratch), so 32 MiB leaves ample headroom and stays within half of v7x's 64 MiB.
_VMEM_LIMIT = 32 * 1024 * 1024

# [R2] single-buffer constant-index weight/bias blocks (flipped off by the fallback in main
# if this JAX version rejects pipeline_mode=pl.Buffered(1)).
_SINGLE_BUFFER_WEIGHTS = True

_GELU_C = math.sqrt(2.0 / math.pi)


def _const_spec(shape):
    """BlockSpec for an operand whose block index is constant over the whole grid
    (weights / biases / LN params). Single-buffered [R2]: double-buffering a block whose
    index never changes doubles VMEM residency for zero overlap benefit."""
    index_map = lambda *_: (0,) * len(shape)
    if _SINGLE_BUFFER_WEIGHTS:
        return pl.BlockSpec(shape, index_map, pipeline_mode=pl.Buffered(1))
    return pl.BlockSpec(shape, index_map)


# ---------------------------------------------------------------------------
# Kernel 1: input projection + positional embedding (NeuroX.input_proj + pos_emb)
# ---------------------------------------------------------------------------
def embed_kernel(x_ref, w_ref, b_ref, pos_ref, o_ref):
    """x:(1,TM,d_in) f32, w:(d_in,E) bf16, b:(1,E) f32, pos:(TM,E) f32 -> o:(1,TM,E) f32."""
    y = jnp.dot(x_ref[0].astype(jnp.bfloat16), w_ref[...],
                preferred_element_type=jnp.float32)
    o_ref[0] = y + b_ref[...] + pos_ref[...]


def input_embedding(x, w_bf16, b_f32, pos_f32, *, block_m=256):   # [R5] 256-row blocks
    B, T, d_in = x.shape
    E = w_bf16.shape[1]
    block_m = min(block_m, T)
    assert T % block_m == 0 and block_m % 8 == 0
    return pl.pallas_call(
        embed_kernel,
        out_shape=jax.ShapeDtypeStruct((B, T, E), jnp.float32),
        grid_spec=pltpu.PrefetchScalarGridSpec(
            num_scalar_prefetch=0,
            grid=(B, T // block_m),
            in_specs=[
                pl.BlockSpec((1, block_m, d_in), lambda b, i: (b, i, 0)),
                _const_spec((d_in, E)),
                _const_spec((1, E)),
                pl.BlockSpec((block_m, E), lambda b, i: (i, 0)),
            ],
            out_specs=pl.BlockSpec((1, block_m, E), lambda b, i: (b, i, 0)),
        ),
        compiler_params=pltpu.CompilerParams(
            dimension_semantics=("parallel", "parallel"),
            vmem_limit_bytes=_VMEM_LIMIT),
    )(x, w_bf16, b_f32, pos_f32)


# ---------------------------------------------------------------------------
# Kernel 2: LayerNorm (norm1) -- bf16 output feeds the QKV matmul directly
# ---------------------------------------------------------------------------
def layernorm_kernel(x_ref, g_ref, s_ref, o_ref):
    x = x_ref[0]                                              # (TM, E) f32
    mean = jnp.mean(x, axis=-1, keepdims=True)
    xc = x - mean
    var = jnp.mean(xc * xc, axis=-1, keepdims=True)           # unbiased=False, as in the module
    o_ref[0] = ((xc * jax.lax.rsqrt(var + 1e-5)) * g_ref[...] + s_ref[...]).astype(o_ref.dtype)


def layer_norm_bf16(x, gamma, shift, *, block_m=256):
    B, T, E = x.shape
    block_m = min(block_m, T)
    assert T % block_m == 0 and block_m % 8 == 0
    return pl.pallas_call(
        layernorm_kernel,
        out_shape=jax.ShapeDtypeStruct((B, T, E), jnp.bfloat16),
        grid_spec=pltpu.PrefetchScalarGridSpec(
            num_scalar_prefetch=0,
            grid=(B, T // block_m),
            in_specs=[
                pl.BlockSpec((1, block_m, E), lambda b, i: (b, i, 0)),
                _const_spec((1, E)),
                _const_spec((1, E)),
            ],
            out_specs=pl.BlockSpec((1, block_m, E), lambda b, i: (b, i, 0)),
        ),
        compiler_params=pltpu.CompilerParams(
            dimension_semantics=("parallel", "parallel"),
            vmem_limit_bytes=_VMEM_LIMIT),
    )(x, gamma, shift)


# ---------------------------------------------------------------------------
# Kernel 3: fused QKV projection, contraction (d_in) tiled with f32 accumulator [R6]
# ---------------------------------------------------------------------------
def qkv_proj_kernel(x_ref, w_ref, b_ref, o_ref, acc_ref):
    """x:(1,TM,TK) bf16 (norm1 output); w:(TK,3E) bf16; b:(1,3E) f32; o:(1,TM,3E) bf16."""
    kk = pl.program_id(2)

    @pl.when(kk == 0)
    def _init():
        acc_ref[...] = jnp.zeros_like(acc_ref)

    acc_ref[...] += jnp.dot(x_ref[0], w_ref[...], preferred_element_type=jnp.float32)

    @pl.when(kk == pl.num_programs(2) - 1)
    def _epilogue():
        o_ref[0] = (acc_ref[...] + b_ref[...]).astype(o_ref.dtype)


def fused_qkv_projection(x_norm, w_qkv_bf16, b_qkv_f32, *, block_m=256, block_k=512):
    B, T, d_in = x_norm.shape
    d3 = w_qkv_bf16.shape[1]
    block_m = min(block_m, T)            # [R5]
    block_k = min(block_k, d_in)
    assert T % block_m == 0 and block_m % 8 == 0
    assert d_in % block_k == 0
    return pl.pallas_call(
        qkv_proj_kernel,
        out_shape=jax.ShapeDtypeStruct((B, T, d3), jnp.bfloat16),
        grid_spec=pltpu.PrefetchScalarGridSpec(
            num_scalar_prefetch=0,
            grid=(B, T // block_m, d_in // block_k),        # reduction axis last
            in_specs=[
                pl.BlockSpec((1, block_m, block_k), lambda b, i, k: (b, i, k)),
                # Weight index varies along the reduction axis -> keep default double
                # buffering so the next K-tile DMA overlaps the current matmul [R6].
                pl.BlockSpec((block_k, d3), lambda b, i, k: (k, 0)),
                _const_spec((1, d3)),                       # bias [R2]
            ],
            out_specs=pl.BlockSpec((1, block_m, d3), lambda b, i, k: (b, i, 0)),
            scratch_shapes=[pltpu.VMEM((block_m, d3), jnp.float32)],
        ),
        compiler_params=pltpu.CompilerParams(
            dimension_semantics=("parallel", "parallel", "arbitrary"),
            vmem_limit_bytes=_VMEM_LIMIT),
    )(x_norm, w_qkv_bf16, b_qkv_f32)


# ---------------------------------------------------------------------------
# Kernel 4: flash-style MHA + fused output projection + fused residual add
# ---------------------------------------------------------------------------
def flash_mha_kernel(q_ref, k_ref, v_ref, wo_ref, bo_ref, res_ref, o_ref,
                     m_s, l_s, acc_s, *, num_heads, head_dim):
    """q:(1,TQ,E) bf16 (pre-scaled by 1/sqrt(head_dim)); k/v:(1,TK,E) bf16;
    wo:(E,E) bf16; bo:(1,E) f32; res:(1,TQ,E) f32 residual stream; o:(1,TQ,E) f32.
    Scratch: m_s/l_s:(TQ,H) f32 running max/sum, acc_s:(TQ,E) f32 context accumulator."""
    ki = pl.program_id(2)

    @pl.when(ki == 0)
    def _init():
        m_s[...] = jnp.full_like(m_s, -jnp.inf)
        l_s[...] = jnp.zeros_like(l_s)
        acc_s[...] = jnp.zeros_like(acc_s)

    q = q_ref[0]
    k = k_ref[0]
    v = v_ref[0]
    tq = q.shape[0]

    # [R4] one dense load of the running stats / accumulator per KV step.
    m_prev = m_s[...]                # (TQ, H)
    l_prev = l_s[...]                # (TQ, H)
    acc_prev = acc_s[...]            # (TQ, E)

    m_cols, l_cols, alpha_blks, pv_blks = [], [], [], []
    for h in range(num_heads):
        cols = slice(h * head_dim, (h + 1) * head_dim)
        # scores[t, s] = sum_d q[t, d] * k[s, d]
        s = jax.lax.dot_general(q[:, cols], k[:, cols], (((1,), (1,)), ((), ())),
                                preferred_element_type=jnp.float32)       # (TQ, TK) f32
        m_ph = m_prev[:, h:h + 1]                                         # (TQ, 1)
        m_nh = jnp.maximum(m_ph, jnp.max(s, axis=-1, keepdims=True))
        alpha = jnp.exp(m_ph - m_nh)                                      # rescale factor
        # TODO(synk): [R9] on v6e/v7x this exp could run in bf16 (EUP bf16) -- kept f32.
        p = jnp.exp(s - m_nh)                                             # (TQ, TK) f32
        l_cols.append(alpha * l_prev[:, h:h + 1] + jnp.sum(p, axis=-1, keepdims=True))
        m_cols.append(m_nh)
        alpha_blks.append(jnp.broadcast_to(alpha, (tq, head_dim)))
        pv_blks.append(jnp.dot(p.astype(v.dtype), v[:, cols],
                               preferred_element_type=jnp.float32))       # (TQ, Dh)

    # [R4] single (TQ, H) store per stat per KV step.
    m_s[...] = jnp.concatenate(m_cols, axis=-1)
    l_s[...] = jnp.concatenate(l_cols, axis=-1)
    # [R3] single lane-dense (TQ, E) read-modify-write of the context accumulator.
    acc_s[...] = (jnp.concatenate(alpha_blks, axis=-1) * acc_prev
                  + jnp.concatenate(pv_blks, axis=-1))

    @pl.when(ki == pl.num_programs(2) - 1)
    def _finalize():
        l_all = l_s[...]                                   # (TQ, H)
        inv = pl.reciprocal(l_all, approx=True)            # EUP slot (cheap)
        inv = inv * (2.0 - l_all * inv)                    # one Newton step for accuracy
        inv_full = jnp.concatenate(
            [jnp.broadcast_to(inv[:, h:h + 1], (tq, head_dim)) for h in range(num_heads)],
            axis=-1)                                       # (TQ, E), lane-dense
        ctx = (acc_s[...] * inv_full).astype(jnp.bfloat16)
        out = jnp.dot(ctx, wo_ref[...], preferred_element_type=jnp.float32) + bo_ref[...]
        # [R8] fused output projection + residual add: the lane-dense f32 store IS the
        # residual stream (kept f32 for accuracy across stacked encoder blocks).
        o_ref[0] = (out + res_ref[0]).astype(o_ref.dtype)


def flash_mha(qkv, wo_bf16, bo_f32, residual, *, num_heads, block_q=256, block_k=256):  # [R1]
    B, T, d3 = qkv.shape
    d_out = d3 // 3
    assert d_out % num_heads == 0
    head_dim = d_out // num_heads
    block_q = min(block_q, T)
    block_k = min(block_k, T)
    # [R10] v7x has two TensorCores; the "parallel" grid axes are what gets sharded across
    # them, so keep at least two parallel steps.
    while B * (T // block_q) < 2 and block_q % 16 == 0:
        block_q //= 2
    assert T % block_q == 0 and T % block_k == 0
    assert block_q % 8 == 0 and block_k % 8 == 0

    kernel = functools.partial(flash_mha_kernel, num_heads=num_heads, head_dim=head_dim)
    return pl.pallas_call(
        kernel,
        out_shape=jax.ShapeDtypeStruct((B, T, d_out), jnp.float32),
        grid_spec=pltpu.PrefetchScalarGridSpec(
            num_scalar_prefetch=0,
            grid=(B, T // block_q, T // block_k),        # KV axis innermost ("arbitrary")
            in_specs=[
                # Q / K / V are lane-blocks 0 / 1 / 2 of the fused qkv array.
                pl.BlockSpec((1, block_q, d_out), lambda b, qi, ki: (b, qi, 0)),
                pl.BlockSpec((1, block_k, d_out), lambda b, qi, ki: (b, ki, 1)),
                pl.BlockSpec((1, block_k, d_out), lambda b, qi, ki: (b, ki, 2)),
                _const_spec((d_out, d_out)),             # Wo   [R2]
                _const_spec((1, d_out)),                 # bo   [R2]
                pl.BlockSpec((1, block_q, d_out), lambda b, qi, ki: (b, qi, 0)),  # residual
            ],
            out_specs=pl.BlockSpec((1, block_q, d_out), lambda b, qi, ki: (b, qi, 0)),
            scratch_shapes=[
                pltpu.VMEM((block_q, num_heads), jnp.float32),   # running max m
                pltpu.VMEM((block_q, num_heads), jnp.float32),   # running sum l
                pltpu.VMEM((block_q, d_out), jnp.float32),       # context accumulator
            ],
        ),
        compiler_params=pltpu.CompilerParams(
            dimension_semantics=("parallel", "parallel", "arbitrary"),
            vmem_limit_bytes=_VMEM_LIMIT),
    )(qkv, qkv, qkv, wo_bf16, bo_f32, residual)


# ---------------------------------------------------------------------------
# Kernel 5: fused norm2 + FeedForward (Linear -> GELU(tanh) -> Linear) + residual
# ---------------------------------------------------------------------------
def ffn_kernel(x_ref, g_ref, s_ref, w1_ref, b1_ref, w2_ref, b2_ref, o_ref):
    """x:(1,TM,E) f32 residual stream; w1:(E,4E) bf16; w2:(4E,E) bf16; o:(1,TM,E) f32."""
    x = x_ref[0]
    mean = jnp.mean(x, axis=-1, keepdims=True)
    xc = x - mean
    var = jnp.mean(xc * xc, axis=-1, keepdims=True)
    h = (xc * jax.lax.rsqrt(var + 1e-5)) * g_ref[...] + s_ref[...]
    a = jnp.dot(h.astype(jnp.bfloat16), w1_ref[...],
                preferred_element_type=jnp.float32) + b1_ref[...]
    # GELU (tanh approximation) exactly as the PyTorch GELU module
    a = 0.5 * a * (1.0 + jnp.tanh(_GELU_C * (a + 0.044715 * a * a * a)))
    y = jnp.dot(a.astype(jnp.bfloat16), w2_ref[...],
                preferred_element_type=jnp.float32) + b2_ref[...]
    o_ref[0] = (y + x).astype(o_ref.dtype)        # residual add, lane-dense f32 store


def fused_ffn(x, gamma, shift, w1_bf16, b1_f32, w2_bf16, b2_f32, *, block_m=256):   # [R5]
    B, T, E = x.shape
    d_ff = w1_bf16.shape[1]
    block_m = min(block_m, T)
    assert T % block_m == 0 and block_m % 8 == 0
    return pl.pallas_call(
        ffn_kernel,
        out_shape=jax.ShapeDtypeStruct((B, T, E), jnp.float32),
        grid_spec=pltpu.PrefetchScalarGridSpec(
            num_scalar_prefetch=0,
            grid=(B, T // block_m),
            in_specs=[
                pl.BlockSpec((1, block_m, E), lambda b, i: (b, i, 0)),
                _const_spec((1, E)),          # gamma  [R2]
                _const_spec((1, E)),          # shift
                _const_spec((E, d_ff)),       # W1
                _const_spec((1, d_ff)),       # b1
                _const_spec((d_ff, E)),       # W2
                _const_spec((1, E)),          # b2
            ],
            out_specs=pl.BlockSpec((1, block_m, E), lambda b, i: (b, i, 0)),
        ),
        compiler_params=pltpu.CompilerParams(
            dimension_semantics=("parallel", "parallel"),
            vmem_limit_bytes=_VMEM_LIMIT),
    )(x, gamma, shift, w1_bf16, b1_f32, w2_bf16, b2_f32)


# ---------------------------------------------------------------------------
# Kernel 6: final LayerNorm + mean-pool over tokens + classifier head
# ---------------------------------------------------------------------------
def head_kernel(x_ref, g_ref, s_ref, wc_ref, bc_ref, o_ref):
    """Whole arrays in VMEM (single program). x:(B,T,E) f32 -> o:(B,C) f32."""
    x = x_ref[...]
    mean = jnp.mean(x, axis=-1, keepdims=True)
    xc = x - mean
    var = jnp.mean(xc * xc, axis=-1, keepdims=True)
    h = (xc * jax.lax.rsqrt(var + 1e-5)) * g_ref[...] + s_ref[...]
    pooled = jnp.mean(h, axis=1)                                   # (B, E)
    o_ref[...] = jnp.dot(pooled, wc_ref[...],
                         preferred_element_type=jnp.float32) + bc_ref[...]


def classifier_head(x, gamma, shift, w_cls, b_cls):
    B = x.shape[0]
    C = w_cls.shape[1]
    return pl.pallas_call(
        head_kernel,
        out_shape=jax.ShapeDtypeStruct((B, C), jnp.float32),
    )(x, gamma, shift, w_cls, b_cls)


# ---------------------------------------------------------------------------
# Full NeuroX forward (eval mode) built from the kernels above
# ---------------------------------------------------------------------------
def neurox_forward_pallas(x, params, *, num_heads):
    E = params["w_in"].shape[1]
    head_dim = E // num_heads
    scale = 1.0 / math.sqrt(head_dim)
    T = x.shape[1]

    # input_proj + pos_emb (drop_emb is eval identity)
    h = input_embedding(x,
                        params["w_in"].astype(jnp.bfloat16),
                        params["b_in"].reshape(1, E),
                        params["pos"][:T])

    for lp in params["layers"]:
        # attention half: norm1 -> fused QKV -> flash attention (+Wo, +residual)
        xn = layer_norm_bf16(h, lp["g1"].reshape(1, E), lp["s1"].reshape(1, E))
        # fold the 1/sqrt(head_dim) softmax scale into Q's weight/bias at trace time
        w_qkv = jnp.concatenate([lp["wq"] * scale, lp["wk"], lp["wv"]],
                                axis=1).astype(jnp.bfloat16)
        b_qkv = jnp.concatenate([lp["bq"] * scale, lp["bk"], lp["bv"]]).reshape(1, 3 * E)
        qkv = fused_qkv_projection(xn, w_qkv, b_qkv)
        h = flash_mha(qkv, lp["wo"].astype(jnp.bfloat16), lp["bo"].reshape(1, E),
                      h, num_heads=num_heads)
        # MLP half: fused norm2 + FFN + residual (drop_resid is eval identity)
        h = fused_ffn(h, lp["g2"].reshape(1, E), lp["s2"].reshape(1, E),
                      lp["w1"].astype(jnp.bfloat16), lp["b1"].reshape(1, -1),
                      lp["w2"].astype(jnp.bfloat16), lp["b2"].reshape(1, E))

    return classifier_head(h,
                           params["gf"].reshape(1, 1, E), params["sf"].reshape(1, 1, E),
                           params["wc"], params["bc"].reshape(1, -1))


# ---------------------------------------------------------------------------
# Pure-JAX f32 reference (mirrors the PyTorch NeuroX module, eval mode)
# ---------------------------------------------------------------------------
def neurox_forward_reference(x, params, *, num_heads):
    def ln(v, g, b):
        m = v.mean(axis=-1, keepdims=True)
        var = ((v - m) ** 2).mean(axis=-1, keepdims=True)
        return (v - m) / jnp.sqrt(var + 1e-5) * g + b

    def gelu(v):
        return 0.5 * v * (1.0 + jnp.tanh(_GELU_C * (v + 0.044715 * v ** 3)))

    B, T, _ = x.shape
    E = params["w_in"].shape[1]
    head_dim = E // num_heads
    h = x @ params["w_in"] + params["b_in"] + params["pos"][:T]
    for lp in params["layers"]:
        y = ln(h, lp["g1"], lp["s1"])
        q = (y @ lp["wq"] + lp["bq"]).reshape(B, T, num_heads, head_dim).transpose(0, 2, 1, 3)
        k = (y @ lp["wk"] + lp["bk"]).reshape(B, T, num_heads, head_dim).transpose(0, 2, 1, 3)
        v = (y @ lp["wv"] + lp["bv"]).reshape(B, T, num_heads, head_dim).transpose(0, 2, 1, 3)
        att = jax.nn.softmax(
            jnp.einsum("bhtd,bhsd->bhts", q, k) / math.sqrt(head_dim), axis=-1)
        ctx = jnp.einsum("bhts,bhsd->bhtd", att, v).transpose(0, 2, 1, 3).reshape(B, T, E)
        h = h + (ctx @ lp["wo"] + lp["bo"])
        y = ln(h, lp["g2"], lp["s2"])
        h = h + (gelu(y @ lp["w1"] + lp["b1"]) @ lp["w2"] + lp["b2"])
    h = ln(h, params["gf"], params["sf"])
    return h.mean(axis=1) @ params["wc"] + params["bc"]


# ---------------------------------------------------------------------------
# Deterministic parameter construction (nn.Linear-style init, weights stored (in, out))
# ---------------------------------------------------------------------------
def _linear_params(key, fan_in, fan_out):
    kw, kb = jax.random.split(key)
    bound = 1.0 / math.sqrt(fan_in)
    w = jax.random.uniform(kw, (fan_in, fan_out), jnp.float32, -bound, bound)
    b = jax.random.uniform(kb, (fan_out,), jnp.float32, -bound, bound)
    return w, b


def init_params(key, cfg, n_layers):
    E = cfg["emb_dim"]
    k_in, k_pos, k_cls, k_fn, k_layers = jax.random.split(key, 5)
    w_in, b_in = _linear_params(k_in, cfg["input_dim"], E)
    pos = jax.random.normal(k_pos, (cfg["ctx_len"], E), jnp.float32)
    wc, bc = _linear_params(k_cls, E, cfg["num_classes"])
    kgf, ksf = jax.random.split(k_fn)
    gf = 1.0 + 0.02 * jax.random.normal(kgf, (E,), jnp.float32)
    sf = 0.02 * jax.random.normal(ksf, (E,), jnp.float32)
    layers = []
    for lk in jax.random.split(k_layers, n_layers):
        ks = jax.random.split(lk, 10)
        wq, bq = _linear_params(ks[0], E, E)          # qkv_bias=True per cfg
        wk, bk = _linear_params(ks[1], E, E)
        wv, bv = _linear_params(ks[2], E, E)
        wo, bo = _linear_params(ks[3], E, E)
        w1, b1 = _linear_params(ks[4], E, 4 * E)
        w2, b2 = _linear_params(ks[5], 4 * E, E)
        layers.append(dict(
            wq=wq, bq=bq, wk=wk, bk=bk, wv=wv, bv=bv, wo=wo, bo=bo,
            w1=w1, b1=b1, w2=w2, b2=b2,
            g1=1.0 + 0.02 * jax.random.normal(ks[6], (E,), jnp.float32),
            s1=0.02 * jax.random.normal(ks[7], (E,), jnp.float32),
            g2=1.0 + 0.02 * jax.random.normal(ks[8], (E,), jnp.float32),
            s2=0.02 * jax.random.normal(ks[9], (E,), jnp.float32)))
    return dict(w_in=w_in, b_in=b_in, pos=pos, wc=wc, bc=bc, gf=gf, sf=sf, layers=layers)


if __name__ == "__main__":
    # Shapes per the NeuroX cfg (input_dim=128, emb_dim=256, ctx_len=512, n_heads=8,
    # num_classes=5, qkv_bias=True). n_layers reduced 6 -> 2 to keep the smoke test small
    # (per-layer math is identical). T = ctx_len so the flash KV loop runs >1 step at
    # block_k=256 and the online-softmax accumulation path is exercised.
    cfg = dict(input_dim=128, emb_dim=256, ctx_len=512, n_heads=8, drop_rate=0.1,
               qkv_bias=True, num_classes=5)
    n_layers = 2
    B, T = 2, 512

    key = jax.random.PRNGKey(0)
    k_x, k_p = jax.random.split(key)
    x = jax.random.normal(k_x, (B, T, cfg["input_dim"]), jnp.float32)
    params = init_params(k_p, cfg, n_layers)

    def run():
        return jax.block_until_ready(
            neurox_forward_pallas(x, params, num_heads=cfg["n_heads"]))

    try:
        logits = run()
    except Exception:
        # Defensive fallback: if this JAX version rejects single-buffered weight specs
        # (pipeline_mode=pl.Buffered(1)), retry with default double buffering.
        _SINGLE_BUFFER_WEIGHTS = False
        logits = run()

    ref = neurox_forward_reference(x, params, num_heads=cfg["n_heads"])
    assert logits.shape == (B, cfg["num_classes"])
    max_err = float(jnp.max(jnp.abs(logits - ref)))
    # bf16 MXU operands with f32 accumulation across 2 encoder blocks -> loosened tolerance.
    assert jnp.allclose(logits, ref, atol=3e-2, rtol=3e-2), \
        f"mismatch vs JAX reference (max abs err {max_err:.4f})"
    print("KERNEL_OK")
</pallas_src>

<mosaic_0001>
module attributes {stable_mosaic.version = 11 : i64} {
  func.func @embed_kernel(%arg0: i32, %arg1: i32, %arg2: memref<1x256x128xf32, #tpu.memory_space<vmem>>, %arg3: memref<128x256xbf16, #tpu.memory_space<vmem>>, %arg4: memref<1x256xf32, #tpu.memory_space<vmem>>, %arg5: memref<256x256xf32, #tpu.memory_space<vmem>>, %arg6: memref<1x256x256xf32, #tpu.memory_space<vmem>>) attributes {dimension_semantics = [#tpu.dimension_semantics<parallel>, #tpu.dimension_semantics<parallel>], iteration_bounds = array<i64: 2, 2>, scalar_prefetch = 0 : i64, scratch_operands = 0 : i64, tpu.core_type = #tpu.core_type<tc>, window_params = [{transform_indices = @transform_0, window_bounds = array<i64: 1, 256, 128>}, {pipeline_mode = #tpu.pipeline_mode<synchronous>, transform_indices = @transform_1, window_bounds = array<i64: 128, 256>}, {pipeline_mode = #tpu.pipeline_mode<synchronous>, transform_indices = @transform_2, window_bounds = array<i64: 1, 256>}, {transform_indices = @transform_3, window_bounds = array<i64: 256, 256>}, {transform_indices = @transform_4, window_bounds = array<i64: 1, 256, 256>}]} {
    %c0 = arith.constant 0 : index
    %c0_0 = arith.constant 0 : index
    %c0_1 = arith.constant 0 : index
    %0 = vector.load %arg2[%c0, %c0_0, %c0_1] : memref<1x256x128xf32, #tpu.memory_space<vmem>>, vector<1x256x128xf32>
    %1 = vector.shape_cast %0 : vector<1x256x128xf32> to vector<256x128xf32>
    %2 = arith.truncf %1 : vector<256x128xf32> to vector<256x128xbf16>
    %c0_2 = arith.constant 0 : index
    %c0_3 = arith.constant 0 : index
    %3 = vector.load %arg3[%c0_2, %c0_3] : memref<128x256xbf16, #tpu.memory_space<vmem>>, vector<128x256xbf16>
    %cst = arith.constant dense<0.000000e+00> : vector<256x256xf32>
    %4 = tpu.matmul %2, %3, %cst {dimension_numbers = #tpu.dot_dimension_numbers<[1], [0], [0], [1], [0, 0, 1, 1], [], []>} : vector<256x128xbf16>, vector<128x256xbf16>, vector<256x256xf32> -> vector<256x256xf32>
    %c0_4 = arith.constant 0 : index
    %c0_5 = arith.constant 0 : index
    %5 = vector.load %arg4[%c0_4, %c0_5] : memref<1x256xf32, #tpu.memory_space<vmem>>, vector<1x256xf32>
    %6 = vector.broadcast %5 : vector<1x256xf32> to vector<256x256xf32>
    %7 = arith.addf %4, %6 : vector<256x256xf32>
    %c0_6 = arith.constant 0 : index
    %c0_7 = arith.constant 0 : index
    %8 = vector.load %arg5[%c0_6, %c0_7] : memref<256x256xf32, #tpu.memory_space<vmem>>, vector<256x256xf32>
    %9 = arith.addf %7, %8 : vector<256x256xf32>
    %c0_8 = arith.constant 0 : index
    %c0_9 = arith.constant 0 : index
    %c0_10 = arith.constant 0 : index
    %10 = vector.load %arg6[%c0_8, %c0_9, %c0_10] : memref<1x256x256xf32, #tpu.memory_space<vmem>>, vector<1x256x256xf32>
    %11 = vector.shape_cast %10 : vector<1x256x256xf32> to vector<256x256xf32>
    %12 = vector.shape_cast %9 : vector<256x256xf32> to vector<1x256x256xf32>
    tpu.vector_store %arg6[%c0_8, %c0_9, %c0_10], %12 {strides = array<i32>} : memref<1x256x256xf32, #tpu.memory_space<vmem>>, vector<1x256x256xf32>,
    return
  }
  func.func @transform_0(%arg0: i32, %arg1: i32) -> (i32, i32, i32) {
    %c0_i32 = arith.constant 0 : i32
    %c0_i32_0 = arith.constant 0 : i32
    return %arg0, %arg1, %c0_i32 : i32, i32, i32
  }
  func.func @transform_1(%arg0: i32, %arg1: i32) -> (i32, i32) {
    %c0_i32 = arith.constant 0 : i32
    %c0_i32_0 = arith.constant 0 : i32
    %c0_i32_1 = arith.constant 0 : i32
    return %c0_i32, %c0_i32_0 : i32, i32
  }
  func.func @transform_2(%arg0: i32, %arg1: i32) -> (i32, i32) {
    %c0_i32 = arith.constant 0 : i32
    %c0_i32_0 = arith.constant 0 : i32
    %c0_i32_1 = arith.constant 0 : i32
    return %c0_i32, %c0_i32_0 : i32, i32
  }
  func.func @transform_3(%arg0: i32, %arg1: i32) -> (i32, i32) {
    %c0_i32 = arith.constant 0 : i32
    %c0_i32_0 = arith.constant 0 : i32
    return %arg1, %c0_i32 : i32, i32
  }
  func.func @transform_4(%arg0: i32, %arg1: i32) -> (i32, i32, i32) {
    %c0_i32 = arith.constant 0 : i32
    %c0_i32_0 = arith.constant 0 : i32
    return %arg0, %arg1, %c0_i32 : i32, i32, i32
  }
}

module attributes {stable_mosaic.version = 11 : i64} {
  func.func @embed_kernel(%arg0: i32, %arg1: i32, %arg2: memref<1x256x128xf32, #tpu.memory_space<vmem>>, %arg3: memref<128x256xbf16, #tpu.memory_space<vmem>>, %arg4: memref<1x256xf32, #tpu.memory_space<vmem>>, %arg5: memref<256x256xf32, #tpu.memory_space<vmem>>, %arg6: memref<1x256x256xf32, #tpu.memory_space<vmem>>) attributes {dimension_semantics = [#tpu.dimension_semantics<parallel>, #tpu.dimension_semantics<parallel>], iteration_bounds = array<i64: 2, 2>, scalar_prefetch = 0 : i64, scratch_operands = 0 : i64, tpu.core_type = #tpu.core_type<tc>, window_params = [{transform_indices = @transform_0, window_bounds = array<i64: 1, 256, 128>}, {pipeline_mode = #tpu.pipeline_mode<synchronous>, transform_indices = @transform_1, window_bounds = array<i64: 128, 256>}, {pipeline_mode = #tpu.pipeline_mode<synchronous>, transform_indices = @transform_2, window_bounds = array<i64: 1, 256>}, {transform_indices = @transform_3, window_bounds = array<i64: 256, 256>}, {transform_indices = @transform_4, window_bounds = array<i64: 1, 256, 256>}]} {
    %c0 = arith.constant 0 : index
    %c0_0 = arith.constant 0 : index
    %c0_1 = arith.constant 0 : index
    %0 = vector.load %arg2[%c0, %c0_0, %c0_1] : memref<1x256x128xf32, #tpu.memory_space<vmem>>, vector<1x256x128xf32>
    %1 = vector.shape_cast %0 : vector<1x256x128xf32> to vector<256x128xf32>
    %2 = arith.truncf %1 : vector<256x128xf32> to vector<256x128xbf16>
    %c0_2 = arith.constant 0 : index
    %c0_3 = arith.constant 0 : index
    %3 = vector.load %arg3[%c0_2, %c0_3] : memref<128x256xbf16, #tpu.memory_space<vmem>>, vector<128x256xbf16>
    %cst = arith.constant dense<0.000000e+00> : vector<256x256xf32>
    %4 = tpu.matmul %2, %3, %cst {dimension_numbers = #tpu.dot_dimension_numbers<[1], [0], [0], [1], [0, 0, 1, 1], [], []>} : vector<256x128xbf16>, vector<128x256xbf16>, vector<256x256xf32> -> vector<256x256xf32>
    %c0_4 = arith.constant 0 : index
    %c0_5 = arith.constant 0 : index
    %5 = vector.load %arg4[%c0_4, %c0_5] : memref<1x256xf32, #tpu.memory_space<vmem>>, vector<1x256xf32>
    %6 = vector.broadcast %5 : vector<1x256xf32> to vector<256x256xf32>
    %7 = arith.addf %4, %6 : vector<256x256xf32>
    %c0_6 = arith.constant 0 : index
    %c0_7 = arith.constant 0 : index
    %8 = vector.load %arg5[%c0_6, %c0_7] : memref<256x256xf32, #tpu.memory_space<vmem>>, vector<256x256xf32>
    %9 = arith.addf %7, %8 : vector<256x256xf32>
    %c0_8 = arith.constant 0 : index
    %c0_9 = arith.constant 0 : index
    %c0_10 = arith.constant 0 : index
    %10 = vector.load %arg6[%c0_8, %c0_9, %c0_10] : memref<1x256x256xf32, #tpu.memory_space<vmem>>, vector<1x256x256xf32>
    %11 = vector.shape_cast %10 : vector<1x256x256xf32> to vector<256x256xf32>
    %12 = vector.shape_cast %9 : vector<256x256xf32> to vector<1x256x256xf32>
    tpu.vector_store %arg6[%c0_8, %c0_9, %c0_10], %12 {strides = array<i32>} : memref<1x256x256xf32, #tpu.memory_space<vmem>>, vector<1x256x256xf32>,
    return
  }
  func.func @transform_0(%arg0: i32, %arg1: i32) -> (i32, i32, i32) {
    %c0_i32 = arith.constant 0 : i32
    %c0_i32_0 = arith.constant 0 : i32
    return %arg0, %arg1, %c0_i32 : i32, i32, i32
  }
  func.func @transform_1(%arg0: i32, %arg1: i32) -> (i32, i32) {
    %c0_i32 = arith.constant 0 : i32
    %c0_i32_0 = arith.constant 0 : i32
    %c0_i32_1 = arith.constant 0 : i32
    return %c0_i32, %c0_i32_0 : i32, i32
  }
  func.func @transform_2(%arg0: i32, %arg1: i32) -> (i32, i32) {
    %c0_i32 = arith.constant 0 : i32
    %c0_i32_0 = arith.constant 0 : i32
    %c0_i32_1 = arith.constant 0 : i32
    return %c0_i32, %c0_i32_0 : i32, i32
  }
  func.func @transform_3(%arg0: i32, %arg1: i32) -> (i32, i32) {
    %c0_i32 = arith.constant 0 : i32
    %c0_i32_0 = arith.constant 0 : i32
    return %arg1, %c0_i32 : i32, i32
  }
  func.func @transform_4(%arg0: i32, %arg1: i32) -> (i32, i32, i32) {
    %c0_i32 = arith.constant 0 : i32
    %c0_i32_0 = arith.constant 0 : i32
    return %arg0, %arg1, %c0_i32 : i32, i32, i32
  }
}

</mosaic_0001>

<llo_original>
// kernel: tpu_custom_call.1
$region0: #{tpu_custom_call.1}
  #allocation0 [shape = 'u32[]', space=smem, size = 0x4, offset = 0x4, fixed_abs, tag = 'smem constant byte address 0x4 - core index']
  #allocation1 [shape = 'u32[144,128]{1,0:T(1,128)}', space=vmem, size = 0x12000, scoped, tag = 'internal scratch']
  %s0 = inlined_call_operand.hbm [shape: f32[2,512,128], index: 0, kind: input, shape index: {}]
  %s1 = inlined_call_operand.hbm [shape: bf16[128,256], index: 1, kind: input, shape index: {}]
  %s2 = inlined_call_operand.vmem [shape: f32[1,256], index: 2, kind: input, shape index: {}]
  %s3 = inlined_call_operand.hbm [shape: f32[512,256], index: 3, kind: input, shape index: {}]
  %s4 = inlined_call_operand.hbm [shape: f32[2,512,256], index: 4, kind: output, shape index: {}]
  %s5 = sld [smem:[#allocation0]]
  $region61: #{tpu_custom_call.1} parent=0
    _
  %s7 = ssub.s32 1, %s5
  %s8 = scalar_select 0, %s7, %s5
  $region1: #{tpu_custom_call.1} parent=0
    #allocation2 [shape = 'u8[262144]{0}', space=vmem, size = 0x40000, scoped, tag = 'input window, operand 0']
    #allocation3 [shape = 's32[2]{0}', space=sflag, size = 0x8, scoped, tag = 'scoped memory for tpu_custom_call.1']
    #allocation4 [shape = 's32[2]{0}', space=sflag, size = 0x8, scoped, tag = 'scoped memory for tpu_custom_call.1']
    #allocation5 [shape = 'u8[65536]{0}', space=vmem, size = 0x10000, scoped, tag = 'input window, operand 1, single buffered']
    #allocation6 [shape = 's32[1]{0}', space=sflag, size = 0x4, scoped, tag = 'scoped memory for tpu_custom_call.1']
    #allocation7 [shape = 'u8[524288]{0}', space=vmem, size = 0x80000, scoped, tag = 'input window, operand 3']
    #allocation8 [shape = 'u8[524288]{0}', space=vmem, size = 0x80000, scoped, tag = 'output window, operand 0']
    %9 = vsyncpa [#allocation3], 0
    %s10 = scalar_lea.sflag [#allocation3], 1
    %11 = vsyncpa %s10, 0
    %12 = vsyncpa [#allocation6], 0
    %13 = vsyncpa [#allocation4], 0
    %s14 = scalar_lea.sflag [#allocation4], 1
    %15 = vsyncpa %s14, 0
    loop: start=0, step=1, limit=6
    $region2: #{tpu_custom_call.1} parent=1 // loop_pre_header
      _
    $region3: #{tpu_custom_call.1} parent=1 // loop_header
      %s17 = sphi 0, %s21
      %p18 = scmp.ge.s32.totalorder %s17, 6
      %s24 = sphi 0, %s36
      %s25 = sphi 0, %s32
      %s26 = sphi 0, %s24
      %s27 = sphi 0, %s25
      %s28 = sphi 0, %s26
      %s29 = sphi 0, %s27
      %s41 = sphi 0, %s43
      %s44 = sphi 0, %s41
      %s45 = sphi 0, %s44
      %s61 = sphi 0, %s45
      %s65 = sphi 0, %s65
      %s67 = sphi 0, %s65
      %s68 = sphi 0, %s67
      %s82 = sphi 0, %s68
      %s86 = sphi 0, %s86
      %s88 = sphi 0, %s86
      %s89 = sphi 0, %s88
      %s103 = sphi 0, %s89
      %s109 = sphi 0, %s111
      %s112 = sphi 0, %s109
      %s113 = sphi 0, %s112
      %s129 = sphi 0, %s113
      %s137 = sphi 0, %s139
      %s140 = sphi 0, %s137
      %s141 = sphi 0, %s140
      %s157 = sphi 0, %s141
    $region4: #{tpu_custom_call.1} parent=1 // loop_header_branch
      %20 = sbr.rel (%p18) target = $region8
    $region5: #{tpu_custom_call.1} parent=1 // loop_body
      %s22 = ssub.s32 %s17, 1
      %s23 = ssub.s32 %s17, 2
      %s30 = sadd.s32 1, %s25
      %p31 = scmp.ge.s32.totalorder %s30, 2
      %s32 = scalar_select %p31, 0, %s30
      %s33 = sadd.s32 1, %s24
      %s34 = scalar_select %p31, %s33, %s24
      %p35 = scmp.ge.s32.totalorder %s34, 2
      %s36 = scalar_select %p35, 0, %s34
      %s37 = ssub.s32 %s24, %s36
      %s38 = ssub.s32 %s25, %s32
      %s39 = sor.u32 %s37, %s38
      %p40 = scmp.eq.s32.totalorder %s39, 0
      %s42 = sadd.s32 %s41, 1
      %s43 = scalar_select %p40, %s41, %s42
      %p46 = pneg %p40
      %p47 = scmp.eq.s32.totalorder %s17, 3
      %p48 = por %p46, %p47
      %p49 = scmp.ne.s32.totalorder %s41, %s44
      %p50 = scmp.eq.s32.totalorder %s17, 0
      %p51 = por %p49, %p50
      %p52 = scmp.ne.s32.totalorder %s41, %s44
      %p53 = scmp.eq.s32.totalorder %s22, 3
      %p54 = por %p52, %p53
      %p55 = scmp.ne.s32.totalorder %s44, %s45
      %p56 = scmp.eq.s32.totalorder %s22, 0
      %p57 = por %p55, %p56
      %p58 = scmp.ne.s32.totalorder %s44, %s45
      %p59 = scmp.eq.s32.totalorder %s23, 3
      %p60 = por %p58, %p59
      %p62 = scmp.ne.s32.totalorder %s45, %s61
      %p63 = scmp.eq.s32.totalorder %s23, 0
      %p64 = por %p62, %p63
      %s66 = sadd.s32 %s65, 1
      %p69 = scmp.eq.s32.totalorder %s17, 3
      %p70 = scmp.ne.s32.totalorder %s65, %s67
      %p71 = scmp.eq.s32.totalorder %s17, 0
      %p72 = por %p70, %p71
      %p73 = scmp.ne.s32.totalorder %s65, %s67
      %p74 = scmp.eq.s32.totalorder %s22, 3
      %p75 = por %p73, %p74
      %p76 = scmp.ne.s32.totalorder %s67, %s68
      %p77 = scmp.eq.s32.totalorder %s22, 0
      %p78 = por %p76, %p77
      %p79 = scmp.ne.s32.totalorder %s67, %s68
      %p80 = scmp.eq.s32.totalorder %s23, 3
      %p81 = por %p79, %p80
      %p83 = scmp.ne.s32.totalorder %s68, %s82
      %p84 = scmp.eq.s32.totalorder %s23, 0
      %p85 = por %p83, %p84
      %s87 = sadd.s32 %s86, 1
      %p90 = scmp.eq.s32.totalorder %s17, 3
      %p91 = scmp.ne.s32.totalorder %s86, %s88
      %p92 = scmp.eq.s32.totalorder %s17, 0
      %p93 = por %p91, %p92
      %p94 = scmp.ne.s32.totalorder %s86, %s88
      %p95 = scmp.eq.s32.totalorder %s22, 3
      %p96 = por %p94, %p95
      %p97 = scmp.ne.s32.totalorder %s88, %s89
      %p98 = scmp.eq.s32.totalorder %s22, 0
      %p99 = por %p97, %p98
      %p100 = scmp.ne.s32.totalorder %s88, %s89
      %p101 = scmp.eq.s32.totalorder %s23, 3
      %p102 = por %p100, %p101
      %p104 = scmp.ne.s32.totalorder %s89, %s103
      %p105 = scmp.eq.s32.totalorder %s23, 0
      %p106 = por %p104, %p105
      %s107 = ssub.s32 %s25, %s32
      %p108 = scmp.eq.s32.totalorder %s107, 0
      %s110 = sadd.s32 %s109, 1
      %s111 = scalar_select %p108, %s109, %s110
      %p114 = pneg %p108
      %p115 = scmp.eq.s32.totalorder %s17, 3
      %p116 = por %p114, %p115
      %p117 = scmp.ne.s32.totalorder %s109, %s112
      %p118 = scmp.eq.s32.totalorder %s17, 0
      %p119 = por %p117, %p118
      %p120 = scmp.ne.s32.totalorder %s109, %s112
      %p121 = scmp.eq.s32.totalorder %s22, 3
      %p122 = por %p120, %p121
      %p123 = scmp.ne.s32.totalorder %s112, %s113
      %p124 = scmp.eq.s32.totalorder %s22, 0
      %p125 = por %p123, %p124
      %p126 = scmp.ne.s32.totalorder %s112, %s113
      %p127 = scmp.eq.s32.totalorder %s23, 3
      %p128 = por %p126, %p127
      %p130 = scmp.ne.s32.totalorder %s113, %s129
      %p131 = scmp.eq.s32.totalorder %s23, 0
      %p132 = por %p130, %p131
      %s133 = ssub.s32 %s24, %s36
      %s134 = ssub.s32 %s25, %s32
      %s135 = sor.u32 %s133, %s134
      %p136 = scmp.eq.s32.totalorder %s135, 0
      %s138 = sadd.s32 %s137, 1
      %s139 = scalar_select %p136, %s137, %s138
      %p142 = pneg %p136
      %p143 = scmp.eq.s32.totalorder %s17, 3
      %p144 = por %p142, %p143
      %p145 = scmp.ne.s32.totalorder %s137, %s140
      %p146 = scmp.eq.s32.totalorder %s17, 0
      %p147 = por %p145, %p146
      %p148 = scmp.ne.s32.totalorder %s137, %s140
      %p149 = scmp.eq.s32.totalorder %s22, 3
      %p150 = por %p148, %p149
      %p151 = scmp.ne.s32.totalorder %s140, %s141
      %p152 = scmp.eq.s32.totalorder %s22, 0
      %p153 = por %p151, %p152
      %p154 = scmp.ne.s32.totalorder %s140, %s141
      %p155 = scmp.eq.s32.totalorder %s23, 3
      %p156 = por %p154, %p155
      %p158 = scmp.ne.s32.totalorder %s141, %s157
      %p159 = scmp.eq.s32.totalorder %s23, 0
      %p160 = por %p158, %p159
      %p161 = scmp.le.s32.totalorder 1, %s17
      %p162 = scmp.lt.s32.totalorder %s17, 5
      %p163 = pnand %p161, %p162
      %p164 = pneg %p163
      // Predicated region
      $region9: #{tpu_custom_call.1} parent=5 // pred_check
        _
      $region10: #{tpu_custom_call.1} parent=5 // pred_check_branch
        %166 = sbr.rel (%p163) target = $region12
      $region11: #{tpu_custom_call.1} parent=5 // pred_region
        %s167 = ssub.s32 %s17, 1
        // Predicated region
        $region13: #{tpu_custom_call.1} parent=11 // pred_check
          %p168 = pneg %p78
        $region14: #{tpu_custom_call.1} parent=11 // pred_check_branch
          %170 = sbr.rel (%p168) target = $region16
        $region15: #{tpu_custom_call.1} parent=11 // pred_region
          %s172 = ssub.s32 2048, 2048
          %173 = vsyncadd [#allocation6], %s172
          %s174 = sshll.u32 [#allocation5], 4
          %s175 = int_to_ptr.vmem [resolvable:$true] %s174
          %180 = dma.hbm_to_vmem [thread:$0]  %s1, 2048, %s175, [#allocation6], 128, 128, 8
        $region16: #{tpu_custom_call.1} parent=11 // pred_fallthru
          _
        // Predicated region
        $region17: #{tpu_custom_call.1} parent=11 // pred_check
          %p181 = pneg %p99
        $region18: #{tpu_custom_call.1} parent=11 // pred_check_branch
          %183 = sbr.rel (%p181) target = $region20
        $region19: #{tpu_custom_call.1} parent=11 // pred_region
          _
        $region20: #{tpu_custom_call.1} parent=11 // pred_fallthru
          _
      $region12: #{tpu_custom_call.1} parent=5 // pred_fallthru
        _
      %p184 = scmp.lt.s32.totalorder %s17, 4
      // Predicated region
      $region21: #{tpu_custom_call.1} parent=5 // pred_check
        %p185 = pneg %p184
      $region22: #{tpu_custom_call.1} parent=5 // pred_check_branch
        %187 = sbr.rel (%p185) target = $region24
      $region23: #{tpu_custom_call.1} parent=5 // pred_region
        // Predicated region
        $region25: #{tpu_custom_call.1} parent=23 // pred_check
          %p188 = pneg %p51
        $region26: #{tpu_custom_call.1} parent=23 // pred_check_branch
          %190 = sbr.rel (%p188) target = $region28
        $region27: #{tpu_custom_call.1} parent=23 // pred_region
          %s191 = sand.u32 %s17, 1
          %s192 = scalar_lea.sflag [#allocation3], %s191
          %s193 = sand.u32 %s41, 1
          %s194 = smul.addr %s193, 256
          %s195 = scalar_lea.vmem [#allocation2], %s194
          %s196 = smul.u32 32, %s25
          %s198 = ssub.s32 4096, 4096
          %199 = vsyncadd %s192, %s198
          %s200 = smul.addr %s24, 64
          %s201 = sadd.s32 %s196, %s200
          %s202 = smul.addr %s201, 128
          %s203 = scalar_lea.hbm %s0, %s202
          %s204 = sshll.u32 %s195, 4
          %s205 = int_to_ptr.vmem [resolvable:$true] %s204
          %210 = dma.hbm_to_vmem [thread:$0]  %s203, 4096, %s205, %s192, 128, 128, 8
        $region28: #{tpu_custom_call.1} parent=23 // pred_fallthru
          _
        // Predicated region
        $region29: #{tpu_custom_call.1} parent=23 // pred_check
          %p211 = pneg %p119
        $region30: #{tpu_custom_call.1} parent=23 // pred_check_branch
          %213 = sbr.rel (%p211) target = $region32
        $region31: #{tpu_custom_call.1} parent=23 // pred_region
          %s214 = sand.u32 %s17, 1
          %s215 = scalar_lea.sflag [#allocation3], %s214
          %s216 = sand.u32 %s109, 1
          %s217 = smul.addr %s216, 512
          %s218 = scalar_lea.vmem [#allocation7], %s217
          %s219 = smul.u32 32, %s25
          %s221 = ssub.s32 8192, 8192
          %222 = vsyncadd %s215, %s221
          %s223 = smul.addr %s219, 2
          %s224 = smul.addr %s223, 128
          %s225 = scalar_lea.hbm %s3, %s224
          %s226 = sshll.u32 %s218, 4
          %s227 = int_to_ptr.vmem [resolvable:$true] %s226
          %232 = dma.hbm_to_vmem [thread:$0]  %s225, 8192, %s227, %s215, 256, 256, 16
        $region32: #{tpu_custom_call.1} parent=23 // pred_fallthru
          _
      $region24: #{tpu_custom_call.1} parent=5 // pred_fallthru
        _
      %p233 = scmp.le.s32.totalorder 1, %s17
      %p234 = scmp.lt.s32.totalorder %s17, 5
      %p235 = pnand %p233, %p234
      %p236 = pneg %p235
      // Predicated region
      $region33: #{tpu_custom_call.1} parent=5 // pred_check
        _
      $region34: #{tpu_custom_call.1} parent=5 // pred_check_branch
        %238 = sbr.rel (%p235) target = $region36
      $region35: #{tpu_custom_call.1} parent=5 // pred_region
        %s239 = ssub.s32 %s17, 1
        %s240 = sand.u32 %s22, 1
        %s241 = scalar_lea.sflag [#allocation3], %s240
        %s242 = sand.u32 %s44, 1
        %s243 = smul.addr %s242, 256
        %s244 = scalar_lea.vmem [#allocation2], %s243
        // Predicated region
        $region37: #{tpu_custom_call.1} parent=35 // pred_check
          %p245 = pneg %p57
        $region38: #{tpu_custom_call.1} parent=35 // pred_check_branch
          %247 = sbr.rel (%p245) target = $region40
        $region39: #{tpu_custom_call.1} parent=35 // pred_region
          %248 = dma.done %s241, 4096
        $region40: #{tpu_custom_call.1} parent=35 // pred_fallthru
          _
        // Predicated region
        $region41: #{tpu_custom_call.1} parent=35 // pred_check
          %p249 = pneg %p78
        $region42: #{tpu_custom_call.1} parent=35 // pred_check_branch
          %251 = sbr.rel (%p249) target = $region44
        $region43: #{tpu_custom_call.1} parent=35 // pred_region
          %252 = dma.done [#allocation6], 2048
        $region44: #{tpu_custom_call.1} parent=35 // pred_fallthru
          _
        %s253 = sand.u32 %s22, 1
        %s254 = scalar_lea.sflag [#allocation3], %s253
        %s255 = sand.u32 %s112, 1
        %s256 = smul.addr %s255, 512
        %s257 = scalar_lea.vmem [#allocation7], %s256
        // Predicated region
        $region45: #{tpu_custom_call.1} parent=35 // pred_check
          %p258 = pneg %p125
        $region46: #{tpu_custom_call.1} parent=35 // pred_check_branch
          %260 = sbr.rel (%p258) target = $region48
        $region47: #{tpu_custom_call.1} parent=35 // pred_region
          %261 = dma.done %s254, 8192
        $region48: #{tpu_custom_call.1} parent=35 // pred_fallthru
          _
        %s262 = sand.u32 %s22, 1
        %s263 = scalar_lea.sflag [#allocation3], %s262
        %s264 = sand.u32 %s44, 1
        %s265 = smul.addr %s264, 256
        %s266 = scalar_lea.vmem [#allocation2], %s265
        %p267 = pneg %p57
        %p268 = pneg %p54
        %p269 = pneg %p78
        %p270 = pneg %p75
        %p271 = pneg %p99
        %p272 = pneg %p96
        %s273 = sand.u32 %s22, 1
        %s274 = scalar_lea.sflag [#allocation3], %s273
        %s275 = sand.u32 %s112, 1
        %s276 = smul.addr %s275, 512
        %s277 = scalar_lea.vmem [#allocation7], %s276
        %p278 = pneg %p125
        %p279 = pneg %p122
        %p280 = pneg %p153
        %p281 = pneg %p150
        %s282 = sand.u32 %s140, 1
        %s283 = scalar_lea.sflag [#allocation4], %s282
        %s284 = sand.u32 %s140, 1
        %s285 = smul.addr %s284, 512
        %s286 = scalar_lea.vmem [#allocation8], %s285
        %s287 = smul.u32 32, %s27
        %s288 = smul.u32 32, %s27
        %s289 = smul.u32 32, %s27
        %v291 = vld [vmem:[%s244] sm:$0xff]
        %v292 = vld [vmem:[%s244 + $0x8] sm:$0xff]
        %v293 = vld [vmem:[%s244 + $0x10] sm:$0xff]
        %v294 = vld [vmem:[%s244 + $0x18] sm:$0xff]
        %v295 = vld [vmem:[%s244 + $0x20] sm:$0xff]
        %v296 = vld [vmem:[%s244 + $0x28] sm:$0xff]
        %v297 = vld [vmem:[%s244 + $0x30] sm:$0xff]
        %v298 = vld [vmem:[%s244 + $0x38] sm:$0xff]
        %v299 = vld [vmem:[%s244 + $0x40] sm:$0xff]
        %v300 = vld [vmem:[%s244 + $0x48] sm:$0xff]
        %v301 = vld [vmem:[%s244 + $0x50] sm:$0xff]
        %v302 = vld [vmem:[%s244 + $0x58] sm:$0xff]
        %v303 = vld [vmem:[%s244 + $0x60] sm:$0xff]
        %v304 = vld [vmem:[%s244 + $0x68] sm:$0xff]
        %v305 = vld [vmem:[%s244 + $0x70] sm:$0xff]
        %v306 = vld [vmem:[%s244 + $0x78] sm:$0xff]
        %v307 = vld [vmem:[%s244 + $0x80] sm:$0xff]
        %v308 = vld [vmem:[%s244 + $0x88] sm:$0xff]
        %v309 = vld [vmem:[%s244 + $0x90] sm:$0xff]
        %v310 = vld [vmem:[%s244 + $0x98] sm:$0xff]
        %v311 = vld [vmem:[%s244 + $0xa0] sm:$0xff]
        %v312 = vld [vmem:[%s244 + $0xa8] sm:$0xff]
        %v313 = vld [vmem:[%s244 + $0xb0] sm:$0xff]
        %v314 = vld [vmem:[%s244 + $0xb8] sm:$0xff]
        %v315 = vld [vmem:[%s244 + $0xc0] sm:$0xff]
        %v316 = vld [vmem:[%s244 + $0xc8] sm:$0xff]
        %v317 = vld [vmem:[%s244 + $0xd0] sm:$0xff]
        %v318 = vld [vmem:[%s244 + $0xd8] sm:$0xff]
        %v319 = vld [vmem:[%s244 + $0xe0] sm:$0xff]
        %v320 = vld [vmem:[%s244 + $0xe8] sm:$0xff]
        %v321 = vld [vmem:[%s244 + $0xf0] sm:$0xff]
        %v322 = vld [vmem:[%s244 + $0xf8] sm:$0xff]
        %v323 = vpack.c.bf16 %v292, %v291
        %v324 = vpack.c.bf16 %v294, %v293
        %v325 = vpack.c.bf16 %v296, %v295
        %v326 = vpack.c.bf16 %v298, %v297
        %v327 = vpack.c.bf16 %v300, %v299
        %v328 = vpack.c.bf16 %v302, %v301
        %v329 = vpack.c.bf16 %v304, %v303
        %v330 = vpack.c.bf16 %v306, %v305
        %v331 = vpack.c.bf16 %v308, %v307
        %v332 = vpack.c.bf16 %v310, %v309
        %v333 = vpack.c.bf16 %v312, %v311
        %v334 = vpack.c.bf16 %v314, %v313
        %v335 = vpack.c.bf16 %v316, %v315
        %v336 = vpack.c.bf16 %v318, %v317
        %v337 = vpack.c.bf16 %v320, %v319
        %v338 = vpack.c.bf16 %v322, %v321
        %v339 = vld [vmem:[#allocation5] sm:$0xff]
        %v340 = vld [vmem:[#allocation5 + $0x8] sm:$0xff]
        %v341 = vld [vmem:[#allocation5 + $0x10] sm:$0xff]
        %v342 = vld [vmem:[#allocation5 + $0x18] sm:$0xff]
        %v343 = vld [vmem:[#allocation5 + $0x20] sm:$0xff]
        %v344 = vld [vmem:[#allocation5 + $0x28] sm:$0xff]
        %v345 = vld [vmem:[#allocation5 + $0x30] sm:$0xff]
        %v346 = vld [vmem:[#allocation5 + $0x38] sm:$0xff]
        %v347 = vld [vmem:[#allocation5 + $0x40] sm:$0xff]
        %v348 = vld [vmem:[#allocation5 + $0x48] sm:$0xff]
        %v349 = vld [vmem:[#allocation5 + $0x50] sm:$0xff]
        %v350 = vld [vmem:[#allocation5 + $0x58] sm:$0xff]
        %v351 = vld [vmem:[#allocation5 + $0x60] sm:$0xff]
        %v352 = vld [vmem:[#allocation5 + $0x68] sm:$0xff]
        %v353 = vld [vmem:[#allocation5 + $0x70] sm:$0xff]
        %v354 = vld [vmem:[#allocation5 + $0x78] sm:$0xff]
        %v355 = vld [vmem:[%s2] sm:$0x3]
        %v357 = vlaneseq
        %v358 = vshrl.u32 %v357, 7
        %v359 = vsub.s32 0, %v358
        %v360 = vrot.slane %v355, %v359
        %v361 = vlaneseq
        %v362 = vshrl.u32 %v361, 7
        %v363 = vsub.s32 1, %v362
        %v364 = vrot.slane %v355, %v363
        %v383 = vunpack.c.l.b16 %v339
        %v384 = vunpack.c.h.b16 %v339
        %v385 = vunpack.c.l.b16 %v340
        %v386 = vunpack.c.h.b16 %v340
        %v387 = vunpack.c.l.b16 %v341
        %v388 = vunpack.c.h.b16 %v341
        %v389 = vunpack.c.l.b16 %v342
        %v390 = vunpack.c.h.b16 %v342
        %v391 = vunpack.c.l.b16 %v343
        %v392 = vunpack.c.h.b16 %v343
        %v393 = vunpack.c.l.b16 %v344
        %v394 = vunpack.c.h.b16 %v344
        %v395 = vunpack.c.l.b16 %v345
        %v396 = vunpack.c.h.b16 %v345
        %v397 = vunpack.c.l.b16 %v346
        %v398 = vunpack.c.h.b16 %v346
        %v399 = vunpack.c.l.b16 %v347
        %v400 = vunpack.c.h.b16 %v347
        %v401 = vunpack.c.l.b16 %v348
        %v402 = vunpack.c.h.b16 %v348
        %v403 = vunpack.c.l.b16 %v349
        %v404 = vunpack.c.h.b16 %v349
        %v405 = vunpack.c.l.b16 %v350
        %v406 = vunpack.c.h.b16 %v350
        %v407 = vunpack.c.l.b16 %v351
        %v408 = vunpack.c.h.b16 %v351
        %v409 = vunpack.c.l.b16 %v352
        %v410 = vunpack.c.h.b16 %v352
        %v411 = vunpack.c.l.b16 %v353
        %v412 = vunpack.c.h.b16 %v353
        %v413 = vunpack.c.l.b16 %v354
        %v414 = vunpack.c.h.b16 %v354
        %v415 = vpack.c.b16 %v385, %v383
        %v416 = vpack.c.b16 %v386, %v384
        %v417 = vpack.c.b16 %v389, %v387
        %v418 = vpack.c.b16 %v390, %v388
        %v419 = vpack.c.b16 %v393, %v391
        %v420 = vpack.c.b16 %v394, %v392
        %v421 = vpack.c.b16 %v397, %v395
        %v422 = vpack.c.b16 %v398, %v396
        %v423 = vpack.c.b16 %v401, %v399
        %v424 = vpack.c.b16 %v402, %v400
        %v425 = vpack.c.b16 %v405, %v403
        %v426 = vpack.c.b16 %v406, %v404
        %v427 = vpack.c.b16 %v409, %v407
        %v428 = vpack.c.b16 %v410, %v408
        %v429 = vpack.c.b16 %v413, %v411
        %v430 = vpack.c.b16 %v414, %v412
        %447 = vmatprep.subr.bf16.mxu0 %v430
        %448 = vmatpush1.bf16.msra.mxu0 %v429
        %449 = vmatprep.subr.bf16.mxu0 %v428
        %450 = vmatpush1.bf16.msra.mxu0 %v427
        %451 = vmatprep.subr.bf16.mxu0 %v426
        %452 = vmatpush1.bf16.msra.mxu0 %v425
        %453 = vmatprep.subr.bf16.mxu0 %v424
        %454 = vmatpush1.bf16.msra.mxu0 %v423
        %455 = vmatprep.subr.bf16.mxu0 %v422
        %456 = vmatpush1.bf16.msra.mxu0 %v421
        %457 = vmatprep.subr.bf16.mxu0 %v420
        %458 = vmatpush1.bf16.msra.mxu0 %v419
        %459 = vmatprep.subr.bf16.mxu0 %v418
        %460 = vmatpush1.bf16.msra.mxu0 %v417
        %461 = vmatprep.subr.bf16.mxu0 %v416
        %462 = vmatpush1.bf16.msra.mxu0 %v415
        %463 = vmatprep.subr.bf16.mxu0 0
        %464 = vmatpush2.bf16.msra.mxu0 0
        %465 = vmatprep.subr.bf16.mxu0 0
        %466 = vmatpush2.bf16.msra.mxu0 0
        %467 = vmatprep.subr.bf16.mxu0 0
        %468 = vmatpush2.bf16.msra.mxu0 0
        %469 = vmatprep.subr.bf16.mxu0 0
        %470 = vmatpush2.bf16.msra.mxu0 0
        %471 = vmatprep.subr.bf16.mxu0 0
        %472 = vmatpush2.bf16.msra.mxu0 0
        %473 = vmatprep.subr.bf16.mxu0 0
        %474 = vmatpush2.bf16.msra.mxu0 0
        %475 = vmatprep.subr.bf16.mxu0 0
        %476 = vmatpush2.bf16.msra.mxu0 0
        %477 = vmatprep.subr.bf16.mxu0 0
        %478 = vmatpush2.bf16.msra.mxu0 0
        %479 = vmatprep.mubr.bf16.mxu0 0
        %480 = vmatmul.mubr.bf16.gmra.mxu0 %v323
        %v481 = vpop.f32.mrf.mxu0
        %v482 = vadd.f32 %v360, %v481
        %v483 = vpop.f32.mrf.mxu0
        %v484 = vadd.f32 %v364, %v483
        %v485 = vpop.f32.mrf.mxu0
        %v486 = vadd.f32 %v360, %v485
        %v487 = vpop.f32.mrf.mxu0
        %v488 = vadd.f32 %v364, %v487
        %489 = vmatprep.mubr.bf16.mxu0 0
        %490 = vmatmul.mubr.bf16.gmra.mxu0 %v324
        %v491 = vpop.f32.mrf.mxu0
        %v492 = vadd.f32 %v360, %v491
        %v493 = vpop.f32.mrf.mxu0
        %v494 = vadd.f32 %v364, %v493
        %v495 = vpop.f32.mrf.mxu0
        %v496 = vadd.f32 %v360, %v495
        %v497 = vpop.f32.mrf.mxu0
        %v498 = vadd.f32 %v364, %v497
        %499 = vmatprep.mubr.bf16.mxu0 0
        %500 = vmatmul.mubr.bf16.gmra.mxu0 %v325
        %v501 = vpop.f32.mrf.mxu0
        %v502 = vadd.f32 %v360, %v501
        %v503 = vpop.f32.mrf.mxu0
        %v504 = vadd.f32 %v364, %v503
        %v505 = vpop.f32.mrf.mxu0
        %v506 = vadd.f32 %v360, %v505
        %v507 = vpop.f32.mrf.mxu0
        %v508 = vadd.f32 %v364, %v507
        %509 = vmatprep.mubr.bf16.mxu0 0
        %510 = vmatmul.mubr.bf16.gmra.mxu0 %v326
        %v511 = vpop.f32.mrf.mxu0
        %v512 = vadd.f32 %v360, %v511
        %v513 = vpop.f32.mrf.mxu0
        %v514 = vadd.f32 %v364, %v513
        %v515 = vpop.f32.mrf.mxu0
        %v516 = vadd.f32 %v360, %v515
        %v517 = vpop.f32.mrf.mxu0
        %v518 = vadd.f32 %v364, %v517
        %519 = vmatprep.mubr.bf16.mxu0 0
        %520 = vmatmul.mubr.bf16.gmra.mxu0 %v327
        %v521 = vpop.f32.mrf.mxu0
        %v522 = vadd.f32 %v360, %v521
        %v523 = vpop.f32.mrf.mxu0
        %v524 = vadd.f32 %v364, %v523
        %v525 = vpop.f32.mrf.mxu0
        %v526 = vadd.f32 %v360, %v525
        %v527 = vpop.f32.mrf.mxu0
        %v528 = vadd.f32 %v364, %v527
        %529 = vmatprep.mubr.bf16.mxu0 0
        %530 = vmatmul.mubr.bf16.gmra.mxu0 %v328
        %v531 = vpop.f32.mrf.mxu0
        %v532 = vadd.f32 %v360, %v531
        %v533 = vpop.f32.mrf.mxu0
        %v534 = vadd.f32 %v364, %v533
        %v535 = vpop.f32.mrf.mxu0
        %v536 = vadd.f32 %v360, %v535
        %v537 = vpop.f32.mrf.mxu0
        %v538 = vadd.f32 %v364, %v537
        %539 = vmatprep.mubr.bf16.mxu0 0
        %540 = vmatmul.mubr.bf16.gmra.mxu0 %v329
        %v541 = vpop.f32.mrf.mxu0
        %v542 = vadd.f32 %v360, %v541
        %v543 = vpop.f32.mrf.mxu0
        %v544 = vadd.f32 %v364, %v543
        %v545 = vpop.f32.mrf.mxu0
        %v546 = vadd.f32 %v360, %v545
        %v547 = vpop.f32.mrf.mxu0
        %v548 = vadd.f32 %v364, %v547
        %549 = vmatprep.mubr.bf16.mxu0 0
        %550 = vmatmul.mubr.bf16.gmra.mxu0 %v330
        %v551 = vpop.f32.mrf.mxu0
        %v552 = vadd.f32 %v360, %v551
        %v553 = vpop.f32.mrf.mxu0
        %v554 = vadd.f32 %v364, %v553
        %v555 = vpop.f32.mrf.mxu0
        %v556 = vadd.f32 %v360, %v555
        %v557 = vpop.f32.mrf.mxu0
        %v558 = vadd.f32 %v364, %v557
        %559 = vmatprep.mubr.bf16.mxu0 0
        %560 = vmatmul.mubr.bf16.gmra.mxu0 %v331
        %v561 = vpop.f32.mrf.mxu0
        %v562 = vadd.f32 %v360, %v561
        %v563 = vpop.f32.mrf.mxu0
        %v564 = vadd.f32 %v364, %v563
        %v565 = vpop.f32.mrf.mxu0
        %v566 = vadd.f32 %v360, %v565
        %v567 = vpop.f32.mrf.mxu0
        %v568 = vadd.f32 %v364, %v567
        %569 = vmatprep.mubr.bf16.mxu0 0
        %570 = vmatmul.mubr.bf16.gmra.mxu0 %v332
        %v571 = vpop.f32.mrf.mxu0
        %v572 = vadd.f32 %v360, %v571
        %v573 = vpop.f32.mrf.mxu0
        %v574 = vadd.f32 %v364, %v573
        %v575 = vpop.f32.mrf.mxu0
        %v576 = vadd.f32 %v360, %v575
        %v577 = vpop.f32.mrf.mxu0
        %v578 = vadd.f32 %v364, %v577
        %579 = vmatprep.mubr.bf16.mxu0 0
        %580 = vmatmul.mubr.bf16.gmra.mxu0 %v333
        %v581 = vpop.f32.mrf.mxu0
        %v582 = vadd.f32 %v360, %v581
        %v583 = vpop.f32.mrf.mxu0
        %v584 = vadd.f32 %v364, %v583
        %v585 = vpop.f32.mrf.mxu0
        %v586 = vadd.f32 %v360, %v585
        %v587 = vpop.f32.mrf.mxu0
        %v588 = vadd.f32 %v364, %v587
        %589 = vmatprep.mubr.bf16.mxu0 0
        %590 = vmatmul.mubr.bf16.gmra.mxu0 %v334
        %v591 = vpop.f32.mrf.mxu0
        %v592 = vadd.f32 %v360, %v591
        %v593 = vpop.f32.mrf.mxu0
        %v594 = vadd.f32 %v364, %v593
        %v595 = vpop.f32.mrf.mxu0
        %v596 = vadd.f32 %v360, %v595
        %v597 = vpop.f32.mrf.mxu0
        %v598 = vadd.f32 %v364, %v597
        %599 = vmatprep.mubr.bf16.mxu0 0
        %600 = vmatmul.mubr.bf16.gmra.mxu0 %v335
        %v601 = vpop.f32.mrf.mxu0
        %v602 = vadd.f32 %v360, %v601
        %v603 = vpop.f32.mrf.mxu0
        %v604 = vadd.f32 %v364, %v603
        %v605 = vpop.f32.mrf.mxu0
        %v606 = vadd.f32 %v360, %v605
        %v607 = vpop.f32.mrf.mxu0
        %v608 = vadd.f32 %v364, %v607
        %609 = vmatprep.mubr.bf16.mxu0 0
        %610 = vmatmul.mubr.bf16.gmra.mxu0 %v336
        %v611 = vpop.f32.mrf.mxu0
        %v612 = vadd.f32 %v360, %v611
        %v613 = vpop.f32.mrf.mxu0
        %v614 = vadd.f32 %v364, %v613
        %v615 = vpop.f32.mrf.mxu0
        %v616 = vadd.f32 %v360, %v615
        %v617 = vpop.f32.mrf.mxu0
        %v618 = vadd.f32 %v364, %v617
        %619 = vmatprep.mubr.bf16.mxu0 0
        %620 = vmatmul.mubr.bf16.gmra.mxu0 %v337
        %v621 = vpop.f32.mrf.mxu0
        %v622 = vadd.f32 %v360, %v621
        %v623 = vpop.f32.mrf.mxu0
        %v624 = vadd.f32 %v364, %v623
        %v625 = vpop.f32.mrf.mxu0
        %v626 = vadd.f32 %v360, %v625
        %v627 = vpop.f32.mrf.mxu0
        %v628 = vadd.f32 %v364, %v627
        %629 = vmatprep.mubr.bf16.mxu0 0
        %630 = vmatmul.mubr.bf16.gmra.mxu0 %v338
        %v631 = vpop.f32.mrf.mxu0
        %v632 = vadd.f32 %v360, %v631
        %v633 = vpop.f32.mrf.mxu0
        %v634 = vadd.f32 %v364, %v633
        %v635 = vpop.f32.mrf.mxu0
        %v636 = vadd.f32 %v360, %v635
        %v637 = vpop.f32.mrf.mxu0
        %v638 = vadd.f32 %v364, %v637
        %639 = vdwg.mxu0
        %v640 = vld [vmem:[%s257] sm:$0xff]
        %v641 = vld [vmem:[%s257 + $0x8] sm:$0xff]
        %v642 = vld [vmem:[%s257 + $0x10] sm:$0xff]
        %v643 = vld [vmem:[%s257 + $0x18] sm:$0xff]
        %v644 = vld [vmem:[%s257 + $0x20] sm:$0xff]
        %v645 = vld [vmem:[%s257 + $0x28] sm:$0xff]
        %v646 = vld [vmem:[%s257 + $0x30] sm:$0xff]
        %v647 = vld [vmem:[%s257 + $0x38] sm:$0xff]
        %v648 = vld [vmem:[%s257 + $0x40] sm:$0xff]
        %v649 = vld [vmem:[%s257 + $0x48] sm:$0xff]
        %v650 = vld [vmem:[%s257 + $0x50] sm:$0xff]
        %v651 = vld [vmem:[%s257 + $0x58] sm:$0xff]
        %v652 = vld [vmem:[%s257 + $0x60] sm:$0xff]
        %v653 = vld [vmem:[%s257 + $0x68] sm:$0xff]
        %v654 = vld [vmem:[%s257 + $0x70] sm:$0xff]
        %v655 = vld [vmem:[%s257 + $0x78] sm:$0xff]
        %v656 = vld [vmem:[%s257 + $0x80] sm:$0xff]
        %v657 = vld [vmem:[%s257 + $0x88] sm:$0xff]
        %v658 = vld [vmem:[%s257 + $0x90] sm:$0xff]
        %v659 = vld [vmem:[%s257 + $0x98] sm:$0xff]
        %v660 = vld [vmem:[%s257 + $0xa0] sm:$0xff]
        %v661 = vld [vmem:[%s257 + $0xa8] sm:$0xff]
        %v662 = vld [vmem:[%s257 + $0xb0] sm:$0xff]
        %v663 = vld [vmem:[%s257 + $0xb8] sm:$0xff]
        %v664 = vld [vmem:[%s257 + $0xc0] sm:$0xff]
        %v665 = vld [vmem:[%s257 + $0xc8] sm:$0xff]
        %v666 = vld [vmem:[%s257 + $0xd0] sm:$0xff]
        %v667 = vld [vmem:[%s257 + $0xd8] sm:$0xff]
        %v668 = vld [vmem:[%s257 + $0xe0] sm:$0xff]
        %v669 = vld [vmem:[%s257 + $0xe8] sm:$0xff]
        %v670 = vld [vmem:[%s257 + $0xf0] sm:$0xff]
        %v671 = vld [vmem:[%s257 + $0xf8] sm:$0xff]
        %v672 = vld [vmem:[%s257 + $0x100] sm:$0xff]
        %v673 = vld [vmem:[%s257 + $0x108] sm:$0xff]
        %v674 = vld [vmem:[%s257 + $0x110] sm:$0xff]
        %v675 = vld [vmem:[%s257 + $0x118] sm:$0xff]
        %v676 = vld [vmem:[%s257 + $0x120] sm:$0xff]
        %v677 = vld [vmem:[%s257 + $0x128] sm:$0xff]
        %v678 = vld [vmem:[%s257 + $0x130] sm:$0xff]
        %v679 = vld [vmem:[%s257 + $0x138] sm:$0xff]
        %v680 = vld [vmem:[%s257 + $0x140] sm:$0xff]
        %v681 = vld [vmem:[%s257 + $0x148] sm:$0xff]
        %v682 = vld [vmem:[%s257 + $0x150] sm:$0xff]
        %v683 = vld [vmem:[%s257 + $0x158] sm:$0xff]
        %v684 = vld [vmem:[%s257 + $0x160] sm:$0xff]
        %v685 = vld [vmem:[%s257 + $0x168] sm:$0xff]
        %v686 = vld [vmem:[%s257 + $0x170] sm:$0xff]
        %v687 = vld [vmem:[%s257 + $0x178] sm:$0xff]
        %v688 = vld [vmem:[%s257 + $0x180] sm:$0xff]
        %v689 = vld [vmem:[%s257 + $0x188] sm:$0xff]
        %v690 = vld [vmem:[%s257 + $0x190] sm:$0xff]
        %v691 = vld [vmem:[%s257 + $0x198] sm:$0xff]
        %v692 = vld [vmem:[%s257 + $0x1a0] sm:$0xff]
        %v693 = vld [vmem:[%s257 + $0x1a8] sm:$0xff]
        %v694 = vld [vmem:[%s257 + $0x1b0] sm:$0xff]
        %v695 = vld [vmem:[%s257 + $0x1b8] sm:$0xff]
        %v696 = vld [vmem:[%s257 + $0x1c0] sm:$0xff]
        %v697 = vld [vmem:[%s257 + $0x1c8] sm:$0xff]
        %v698 = vld [vmem:[%s257 + $0x1d0] sm:$0xff]
        %v699 = vld [vmem:[%s257 + $0x1d8] sm:$0xff]
        %v700 = vld [vmem:[%s257 + $0x1e0] sm:$0xff]
        %v701 = vld [vmem:[%s257 + $0x1e8] sm:$0xff]
        %v702 = vld [vmem:[%s257 + $0x1f0] sm:$0xff]
        %v703 = vld [vmem:[%s257 + $0x1f8] sm:$0xff]
        %v704 = vadd.f32 %v482, %v640
        %v705 = vadd.f32 %v484, %v641
        %v706 = vadd.f32 %v486, %v642
        %v707 = vadd.f32 %v488, %v643
        %v708 = vadd.f32 %v492, %v644
        %v709 = vadd.f32 %v494, %v645
        %v710 = vadd.f32 %v496, %v646
        %v711 = vadd.f32 %v498, %v647
        %v712 = vadd.f32 %v502, %v648
        %v713 = vadd.f32 %v504, %v649
        %v714 = vadd.f32 %v506, %v650
        %v715 = vadd.f32 %v508, %v651
        %v716 = vadd.f32 %v512, %v652
        %v717 = vadd.f32 %v514, %v653
        %v718 = vadd.f32 %v516, %v654
        %v719 = vadd.f32 %v518, %v655
        %v720 = vadd.f32 %v522, %v656
        %v721 = vadd.f32 %v524, %v657
        %v722 = vadd.f32 %v526, %v658
        %v723 = vadd.f32 %v528, %v659
        %v724 = vadd.f32 %v532, %v660
        %v725 = vadd.f32 %v534, %v661
        %v726 = vadd.f32 %v536, %v662
        %v727 = vadd.f32 %v538, %v663
        %v728 = vadd.f32 %v542, %v664
        %v729 = vadd.f32 %v544, %v665
        %v730 = vadd.f32 %v546, %v666
        %v731 = vadd.f32 %v548, %v667
        %v732 = vadd.f32 %v552, %v668
        %v733 = vadd.f32 %v554, %v669
        %v734 = vadd.f32 %v556, %v670
        %v735 = vadd.f32 %v558, %v671
        %v736 = vadd.f32 %v562, %v672
        %v737 = vadd.f32 %v564, %v673
        %v738 = vadd.f32 %v566, %v674
        %v739 = vadd.f32 %v568, %v675
        %v740 = vadd.f32 %v572, %v676
        %v741 = vadd.f32 %v574, %v677
        %v742 = vadd.f32 %v576, %v678
        %v743 = vadd.f32 %v578, %v679
        %v744 = vadd.f32 %v582, %v680
        %v745 = vadd.f32 %v584, %v681
        %v746 = vadd.f32 %v586, %v682
        %v747 = vadd.f32 %v588, %v683
        %v748 = vadd.f32 %v592, %v684
        %v749 = vadd.f32 %v594, %v685
        %v750 = vadd.f32 %v596, %v686
        %v751 = vadd.f32 %v598, %v687
        %v752 = vadd.f32 %v602, %v688
        %v753 = vadd.f32 %v604, %v689
        %v754 = vadd.f32 %v606, %v690
        %v755 = vadd.f32 %v608, %v691
        %v756 = vadd.f32 %v612, %v692
        %v757 = vadd.f32 %v614, %v693
        %v758 = vadd.f32 %v616, %v694
        %v759 = vadd.f32 %v618, %v695
        %v760 = vadd.f32 %v622, %v696
        %v761 = vadd.f32 %v624, %v697
        %v762 = vadd.f32 %v626, %v698
        %v763 = vadd.f32 %v628, %v699
        %v764 = vadd.f32 %v632, %v700
        %v765 = vadd.f32 %v634, %v701
        %v766 = vadd.f32 %v636, %v702
        %v767 = vadd.f32 %v638, %v703
        %768 = vst [vmem:[%s286] sm:$0xff] %v704
        %769 = vst [vmem:[%s286 + $0x8] sm:$0xff] %v705
        %770 = vst [vmem:[%s286 + $0x10] sm:$0xff] %v706
        %771 = vst [vmem:[%s286 + $0x18] sm:$0xff] %v707
        %772 = vst [vmem:[%s286 + $0x20] sm:$0xff] %v708
        %773 = vst [vmem:[%s286 + $0x28] sm:$0xff] %v709
        %774 = vst [vmem:[%s286 + $0x30] sm:$0xff] %v710
        %775 = vst [vmem:[%s286 + $0x38] sm:$0xff] %v711
        %776 = vst [vmem:[%s286 + $0x40] sm:$0xff] %v712
        %777 = vst [vmem:[%s286 + $0x48] sm:$0xff] %v713
        %778 = vst [vmem:[%s286 + $0x50] sm:$0xff] %v714
        %779 = vst [vmem:[%s286 + $0x58] sm:$0xff] %v715
        %780 = vst [vmem:[%s286 + $0x60] sm:$0xff] %v716
        %781 = vst [vmem:[%s286 + $0x68] sm:$0xff] %v717
        %782 = vst [vmem:[%s286 + $0x70] sm:$0xff] %v718
        %783 = vst [vmem:[%s286 + $0x78] sm:$0xff] %v719
        %784 = vst [vmem:[%s286 + $0x80] sm:$0xff] %v720
        %785 = vst [vmem:[%s286 + $0x88] sm:$0xff] %v721
        %786 = vst [vmem:[%s286 + $0x90] sm:$0xff] %v722
        %787 = vst [vmem:[%s286 + $0x98] sm:$0xff] %v723
        %788 = vst [vmem:[%s286 + $0xa0] sm:$0xff] %v724
        %789 = vst [vmem:[%s286 + $0xa8] sm:$0xff] %v725
        %790 = vst [vmem:[%s286 + $0xb0] sm:$0xff] %v726
        %791 = vst [vmem:[%s286 + $0xb8] sm:$0xff] %v727
        %792 = vst [vmem:[%s286 + $0xc0] sm:$0xff] %v728
        %793 = vst [vmem:[%s286 + $0xc8] sm:$0xff] %v729
        %794 = vst [vmem:[%s286 + $0xd0] sm:$0xff] %v730
        %795 = vst [vmem:[%s286 + $0xd8] sm:$0xff] %v731
        %796 = vst [vmem:[%s286 + $0xe0] sm:$0xff] %v732
        %797 = vst [vmem:[%s286 + $0xe8] sm:$0xff] %v733
        %798 = vst [vmem:[%s286 + $0xf0] sm:$0xff] %v734
        %799 = vst [vmem:[%s286 + $0xf8] sm:$0xff] %v735
        %800 = vst [vmem:[%s286 + $0x100] sm:$0xff] %v736
        %801 = vst [vmem:[%s286 + $0x108] sm:$0xff] %v737
        %802 = vst [vmem:[%s286 + $0x110] sm:$0xff] %v738
        %803 = vst [vmem:[%s286 + $0x118] sm:$0xff] %v739
        %804 = vst [vmem:[%s286 + $0x120] sm:$0xff] %v740
        %805 = vst [vmem:[%s286 + $0x128] sm:$0xff] %v741
        %806 = vst [vmem:[%s286 + $0x130] sm:$0xff] %v742
        %807 = vst [vmem:[%s286 + $0x138] sm:$0xff] %v743
        %808 = vst [vmem:[%s286 + $0x140] sm:$0xff] %v744
        %809 = vst [vmem:[%s286 + $0x148] sm:$0xff] %v745
        %810 = vst [vmem:[%s286 + $0x150] sm:$0xff] %v746
        %811 = vst [vmem:[%s286 + $0x158] sm:$0xff] %v747
        %812 = vst [vmem:[%s286 + $0x160] sm:$0xff] %v748
        %813 = vst [vmem:[%s286 + $0x168] sm:$0xff] %v749
        %814 = vst [vmem:[%s286 + $0x170] sm:$0xff] %v750
        %815 = vst [vmem:[%s286 + $0x178] sm:$0xff] %v751
        %816 = vst [vmem:[%s286 + $0x180] sm:$0xff] %v752
        %817 = vst [vmem:[%s286 + $0x188] sm:$0xff] %v753
        %818 = vst [vmem:[%s286 + $0x190] sm:$0xff] %v754
        %819 = vst [vmem:[%s286 + $0x198] sm:$0xff] %v755
        %820 = vst [vmem:[%s286 + $0x1a0] sm:$0xff] %v756
        %821 = vst [vmem:[%s286 + $0x1a8] sm:$0xff] %v757
        %822 = vst [vmem:[%s286 + $0x1b0] sm:$0xff] %v758
        %823 = vst [vmem:[%s286 + $0x1b8] sm:$0xff] %v759
        %824 = vst [vmem:[%s286 + $0x1c0] sm:$0xff] %v760
        %825 = vst [vmem:[%s286 + $0x1c8] sm:$0xff] %v761
        %826 = vst [vmem:[%s286 + $0x1d0] sm:$0xff] %v762
        %827 = vst [vmem:[%s286 + $0x1d8] sm:$0xff] %v763
        %828 = vst [vmem:[%s286 + $0x1e0] sm:$0xff] %v764
        %829 = vst [vmem:[%s286 + $0x1e8] sm:$0xff] %v765
        %830 = vst [vmem:[%s286 + $0x1f0] sm:$0xff] %v766
        %831 = vst [vmem:[%s286 + $0x1f8] sm:$0xff] %v767
        %s832 = sand.u32 %s140, 1
        %s833 = scalar_lea.sflag [#allocation4], %s832
        %s834 = sand.u32 %s140, 1
        %s835 = smul.addr %s834, 512
        %s836 = scalar_lea.vmem [#allocation8], %s835
        // Predicated region
        $region49: #{tpu_custom_call.1} parent=35 // pred_check
          %p837 = pneg %p150
        $region50: #{tpu_custom_call.1} parent=35 // pred_check_branch
          %839 = sbr.rel (%p837) target = $region52
        $region51: #{tpu_custom_call.1} parent=35 // pred_region
          %s840 = smul.u32 32, %s27
          %s842 = ssub.s32 8192, 8192
          %843 = vsyncadd %s833, %s842
          %s844 = smul.addr %s840, 2
          %s845 = smul.addr %s26, 128
          %s846 = sadd.s32 %s844, %s845
          %s847 = smul.addr %s846, 128
          %s848 = scalar_lea.hbm %s4, %s847
          %s849 = sshll.u32 %s836, 4
          %s850 = int_to_ptr.vmem [resolvable:$true] %s849
          %855 = dma.vmem_to_hbm [thread:$0]  %s850, 8192, %s848, %s833, 256, 256, 16
        $region52: #{tpu_custom_call.1} parent=35 // pred_fallthru
          _
      $region36: #{tpu_custom_call.1} parent=5 // pred_fallthru
        _
      %p856 = scmp.le.s32.totalorder 2, %s17
      // Predicated region
      $region53: #{tpu_custom_call.1} parent=5 // pred_check
        %p857 = pneg %p856
      $region54: #{tpu_custom_call.1} parent=5 // pred_check_branch
        %859 = sbr.rel (%p857) target = $region56
      $region55: #{tpu_custom_call.1} parent=5 // pred_region
        %s860 = ssub.s32 %s17, 2
        // Predicated region
        $region57: #{tpu_custom_call.1} parent=55 // pred_check
          %p861 = pneg %p156
        $region58: #{tpu_custom_call.1} parent=55 // pred_check_branch
          %863 = sbr.rel (%p861) target = $region60
        $region59: #{tpu_custom_call.1} parent=55 // pred_region
          %s864 = sand.u32 %s141, 1
          %s865 = scalar_lea.sflag [#allocation4], %s864
          %s866 = sand.u32 %s141, 1
          %s867 = smul.addr %s866, 512
          %s868 = scalar_lea.vmem [#allocation8], %s867
          %869 = dma.done %s865, 8192
        $region60: #{tpu_custom_call.1} parent=55 // pred_fallthru
          _
      $region56: #{tpu_custom_call.1} parent=5 // pred_fallthru
        _
    $region6: #{tpu_custom_call.1} parent=1 // loop_footer
      %s21 = sadd.s32 1, %s17
    $region7: #{tpu_custom_call.1} parent=1 // loop_footer_branch
      %16 = sbr.rel target = $region3
    $region8: #{tpu_custom_call.1} parent=1 // loop_exit
      _
    %870 = vsyncpa [#allocation3], 1
    %s871 = scalar_lea.sflag [#allocation3], 1
    %872 = vsyncpa %s871, 1
    %873 = vsyncpa [#allocation6], 1
    %874 = vsyncpa [#allocation4], 1
    %s875 = scalar_lea.sflag [#allocation4], 1
    %876 = vsyncpa %s875, 1

// kernel: tpu_custom_call.1
$region0: #{tpu_custom_call.1}
  #allocation0 [shape = 'u32[]', space=smem, size = 0x4, offset = 0x4, fixed_abs, tag = 'smem constant byte address 0x4 - core index']
  #allocation1 [shape = 'u32[144,128]{1,0:T(1,128)}', space=vmem, size = 0x12000, scoped, tag = 'internal scratch']
  %s0 = inlined_call_operand.hbm [shape: f32[2,512,128], index: 0, kind: input, shape index: {}]
  %s1 = inlined_call_operand.hbm [shape: bf16[128,256], index: 1, kind: input, shape index: {}]
  %s2 = inlined_call_operand.vmem [shape: f32[1,256], index: 2, kind: input, shape index: {}]
  %s3 = inlined_call_operand.hbm [shape: f32[512,256], index: 3, kind: input, shape index: {}]
  %s4 = inlined_call_operand.hbm [shape: f32[2,512,256], index: 4, kind: output, shape index: {}]
  %s5 = sld [smem:[#allocation0]]
  $region61: #{tpu_custom_call.1} parent=0
    _
  %s7 = ssub.s32 1, %s5
  %s8 = scalar_select 0, %s7, %s5
  $region1: #{tpu_custom_call.1} parent=0
    #allocation2 [shape = 'u8[262144]{0}', space=vmem, size = 0x40000, scoped, tag = 'input window, operand 0']
    #allocation3 [shape = 's32[2]{0}', space=sflag, size = 0x8, scoped, tag = 'scoped memory for tpu_custom_call.1']
    #allocation4 [shape = 's32[2]{0}', space=sflag, size = 0x8, scoped, tag = 'scoped memory for tpu_custom_call.1']
    #allocation5 [shape = 'u8[65536]{0}', space=vmem, size = 0x10000, scoped, tag = 'input window, operand 1, single buffered']
    #allocation6 [shape = 's32[1]{0}', space=sflag, size = 0x4, scoped, tag = 'scoped memory for tpu_custom_call.1']
    #allocation7 [shape = 'u8[524288]{0}', space=vmem, size = 0x80000, scoped, tag = 'input window, operand 3']
    #allocation8 [shape = 'u8[524288]{0}', space=vmem, size = 0x80000, scoped, tag = 'output window, operand 0']
    %9 = vsyncpa [#allocation3], 0
    %s10 = scalar_lea.sflag [#allocation3], 1
    %11 = vsyncpa %s10, 0
    %12 = vsyncpa [#allocation6], 0
    %13 = vsyncpa [#allocation4], 0
    %s14 = scalar_lea.sflag [#allocation4], 1
    %15 = vsyncpa %s14, 0
    loop: start=0, step=1, limit=6
    $region2: #{tpu_custom_call.1} parent=1 // loop_pre_header
      _
    $region3: #{tpu_custom_call.1} parent=1 // loop_header
      %s17 = sphi 0, %s21
      %p18 = scmp.ge.s32.totalorder %s17, 6
      %s24 = sphi 0, %s36
      %s25 = sphi 0, %s32
      %s26 = sphi 0, %s24
      %s27 = sphi 0, %s25
      %s28 = sphi 0, %s26
      %s29 = sphi 0, %s27
      %s41 = sphi 0, %s43
      %s44 = sphi 0, %s41
      %s45 = sphi 0, %s44
      %s61 = sphi 0, %s45
      %s65 = sphi 0, %s65
      %s67 = sphi 0, %s65
      %s68 = sphi 0, %s67
      %s82 = sphi 0, %s68
      %s86 = sphi 0, %s86
      %s88 = sphi 0, %s86
      %s89 = sphi 0, %s88
      %s103 = sphi 0, %s89
      %s109 = sphi 0, %s111
      %s112 = sphi 0, %s109
      %s113 = sphi 0, %s112
      %s129 = sphi 0, %s113
      %s137 = sphi 0, %s139
      %s140 = sphi 0, %s137
      %s141 = sphi 0, %s140
      %s157 = sphi 0, %s141
    $region4: #{tpu_custom_call.1} parent=1 // loop_header_branch
      %20 = sbr.rel (%p18) target = $region8
    $region5: #{tpu_custom_call.1} parent=1 // loop_body
      %s22 = ssub.s32 %s17, 1
      %s23 = ssub.s32 %s17, 2
      %s30 = sadd.s32 1, %s25
      %p31 = scmp.ge.s32.totalorder %s30, 2
      %s32 = scalar_select %p31, 0, %s30
      %s33 = sadd.s32 1, %s24
      %s34 = scalar_select %p31, %s33, %s24
      %p35 = scmp.ge.s32.totalorder %s34, 2
      %s36 = scalar_select %p35, 0, %s34
      %s37 = ssub.s32 %s24, %s36
      %s38 = ssub.s32 %s25, %s32
      %s39 = sor.u32 %s37, %s38
      %p40 = scmp.eq.s32.totalorder %s39, 0
      %s42 = sadd.s32 %s41, 1
      %s43 = scalar_select %p40, %s41, %s42
      %p46 = pneg %p40
      %p47 = scmp.eq.s32.totalorder %s17, 3
      %p48 = por %p46, %p47
      %p49 = scmp.ne.s32.totalorder %s41, %s44
      %p50 = scmp.eq.s32.totalorder %s17, 0
      %p51 = por %p49, %p50
      %p52 = scmp.ne.s32.totalorder %s41, %s44
      %p53 = scmp.eq.s32.totalorder %s22, 3
      %p54 = por %p52, %p53
      %p55 = scmp.ne.s32.totalorder %s44, %s45
      %p56 = scmp.eq.s32.totalorder %s22, 0
      %p57 = por %p55, %p56
      %p58 = scmp.ne.s32.totalorder %s44, %s45
      %p59 = scmp.eq.s32.totalorder %s23, 3
      %p60 = por %p58, %p59
      %p62 = scmp.ne.s32.totalorder %s45, %s61
      %p63 = scmp.eq.s32.totalorder %s23, 0
      %p64 = por %p62, %p63
      %s66 = sadd.s32 %s65, 1
      %p69 = scmp.eq.s32.totalorder %s17, 3
      %p70 = scmp.ne.s32.totalorder %s65, %s67
      %p71 = scmp.eq.s32.totalorder %s17, 0
      %p72 = por %p70, %p71
      %p73 = scmp.ne.s32.totalorder %s65, %s67
      %p74 = scmp.eq.s32.totalorder %s22, 3
      %p75 = por %p73, %p74
      %p76 = scmp.ne.s32.totalorder %s67, %s68
      %p77 = scmp.eq.s32.totalorder %s22, 0
      %p78 = por %p76, %p77
      %p79 = scmp.ne.s32.totalorder %s67, %s68
      %p80 = scmp.eq.s32.totalorder %s23, 3
      %p81 = por %p79, %p80
      %p83 = scmp.ne.s32.totalorder %s68, %s82
      %p84 = scmp.eq.s32.totalorder %s23, 0
      %p85 = por %p83, %p84
      %s87 = sadd.s32 %s86, 1
      %p90 = scmp.eq.s32.totalorder %s17, 3
      %p91 = scmp.ne.s32.totalorder %s86, %s88
      %p92 = scmp.eq.s32.totalorder %s17, 0
      %p93 = por %p91, %p92
      %p94 = scmp.ne.s32.totalorder %s86, %s88
      %p95 = scmp.eq.s32.totalorder %s22, 3
      %p96 = por %p94, %p95
      %p97 = scmp.ne.s32.totalorder %s88, %s89
      %p98 = scmp.eq.s32.totalorder %s22, 0
      %p99 = por %p97, %p98
      %p100 = scmp.ne.s32.totalorder %s88, %s89
      %p101 = scmp.eq.s32.totalorder %s23, 3
      %p102 = por %p100, %p101
      %p104 = scmp.ne.s32.totalorder %s89, %s103
      %p105 = scmp.eq.s32.totalorder %s23, 0
      %p106 = por %p104, %p105
      %s107 = ssub.s32 %s25, %s32
      %p108 = scmp.eq.s32.totalorder %s107, 0
      %s110 = sadd.s32 %s109, 1
      %s111 = scalar_select %p108, %s109, %s110
      %p114 = pneg %p108
      %p115 = scmp.eq.s32.totalorder %s17, 3
      %p116 = por %p114, %p115
      %p117 = scmp.ne.s32.totalorder %s109, %s112
      %p118 = scmp.eq.s32.totalorder %s17, 0
      %p119 = por %p117, %p118
      %p120 = scmp.ne.s32.totalorder %s109, %s112
      %p121 = scmp.eq.s32.totalorder %s22, 3
      %p122 = por %p120, %p121
      %p123 = scmp.ne.s32.totalorder %s112, %s113
      %p124 = scmp.eq.s32.totalorder %s22, 0
      %p125 = por %p123, %p124
      %p126 = scmp.ne.s32.totalorder %s112, %s113
      %p127 = scmp.eq.s32.totalorder %s23, 3
      %p128 = por %p126, %p127
      %p130 = scmp.ne.s32.totalorder %s113, %s129
      %p131 = scmp.eq.s32.totalorder %s23, 0
      %p132 = por %p130, %p131
      %s133 = ssub.s32 %s24, %s36
      %s134 = ssub.s32 %s25, %s32
      %s135 = sor.u32 %s133, %s134
      %p136 = scmp.eq.s32.totalorder %s135, 0
      %s138 = sadd.s32 %s137, 1
      %s139 = scalar_select %p136, %s137, %s138
      %p142 = pneg %p136
      %p143 = scmp.eq.s32.totalorder %s17, 3
      %p144 = por %p142, %p143
      %p145 = scmp.ne.s32.totalorder %s137, %s140
      %p146 = scmp.eq.s32.totalorder %s17, 0
      %p147 = por %p145, %p146
      %p148 = scmp.ne.s32.totalorder %s137, %s140
      %p149 = scmp.eq.s32.totalorder %s22, 3
      %p150 = por %p148, %p149
      %p151 = scmp.ne.s32.totalorder %s140, %s141
      %p152 = scmp.eq.s32.totalorder %s22, 0
      %p153 = por %p151, %p152
      %p154 = scmp.ne.s32.totalorder %s140, %s141
      %p155 = scmp.eq.s32.totalorder %s23, 3
      %p156 = por %p154, %p155
      %p158 = scmp.ne.s32.totalorder %s141, %s157
      %p159 = scmp.eq.s32.totalorder %s23, 0
      %p160 = por %p158, %p159
      %p161 = scmp.le.s32.totalorder 1, %s17
      %p162 = scmp.lt.s32.totalorder %s17, 5
      %p163 = pnand %p161, %p162
      %p164 = pneg %p163
      // Predicated region
      $region9: #{tpu_custom_call.1} parent=5 // pred_check
        _
      $region10: #{tpu_custom_call.1} parent=5 // pred_check_branch
        %166 = sbr.rel (%p163) target = $region12
      $region11: #{tpu_custom_call.1} parent=5 // pred_region
        %s167 = ssub.s32 %s17, 1
        // Predicated region
        $region13: #{tpu_custom_call.1} parent=11 // pred_check
          %p168 = pneg %p78
        $region14: #{tpu_custom_call.1} parent=11 // pred_check_branch
          %170 = sbr.rel (%p168) target = $region16
        $region15: #{tpu_custom_call.1} parent=11 // pred_region
          %s172 = ssub.s32 2048, 2048
          %173 = vsyncadd [#allocation6], %s172
          %s174 = sshll.u32 [#allocation5], 4
          %s175 = int_to_ptr.vmem [resolvable:$true] %s174
          %180 = dma.hbm_to_vmem [thread:$0]  %s1, 2048, %s175, [#allocation6], 128, 128, 8
        $region16: #{tpu_custom_call.1} parent=11 // pred_fallthru
          _
        // Predicated region
        $region17: #{tpu_custom_call.1} parent=11 // pred_check
          %p181 = pneg %p99
        $region18: #{tpu_custom_call.1} parent=11 // pred_check_branch
          %183 = sbr.rel (%p181) target = $region20
        $region19: #{tpu_custom_call.1} parent=11 // pred_region
          _
        $region20: #{tpu_custom_call.1} parent=11 // pred_fallthru
          _
      $region12: #{tpu_custom_call.1} parent=5 // pred_fallthru
        _
      %p184 = scmp.lt.s32.totalorder %s17, 4
      // Predicated region
      $region21: #{tpu_custom_call.1} parent=5 // pred_check
        %p185 = pneg %p184
      $region22: #{tpu_custom_call.1} parent=5 // pred_check_branch
        %187 = sbr.rel (%p185) target = $region24
      $region23: #{tpu_custom_call.1} parent=5 // pred_region
        // Predicated region
        $region25: #{tpu_custom_call.1} parent=23 // pred_check
          %p188 = pneg %p51
        $region26: #{tpu_custom_call.1} parent=23 // pred_check_branch
          %190 = sbr.rel (%p188) target = $region28
        $region27: #{tpu_custom_call.1} parent=23 // pred_region
          %s191 = sand.u32 %s17, 1
          %s192 = scalar_lea.sflag [#allocation3], %s191
          %s193 = sand.u32 %s41, 1
          %s194 = smul.addr %s193, 256
          %s195 = scalar_lea.vmem [#allocation2], %s194
          %s196 = smul.u32 32, %s25
          %s198 = ssub.s32 4096, 4096
          %199 = vsyncadd %s192, %s198
          %s200 = smul.addr %s24, 64
          %s201 = sadd.s32 %s196, %s200
          %s202 = smul.addr %s201, 128
          %s203 = scalar_lea.hbm %s0, %s202
          %s204 = sshll.u32 %s195, 4
          %s205 = int_to_ptr.vmem [resolvable:$true] %s204
          %210 = dma.hbm_to_vmem [thread:$0]  %s203, 4096, %s205, %s192, 128, 128, 8
        $region28: #{tpu_custom_call.1} parent=23 // pred_fallthru
          _
        // Predicated region
        $region29: #{tpu_custom_call.1} parent=23 // pred_check
          %p211 = pneg %p119
        $region30: #{tpu_custom_call.1} parent=23 // pred_check_branch
          %213 = sbr.rel (%p211) target = $region32
        $region31: #{tpu_custom_call.1} parent=23 // pred_region
          %s214 = sand.u32 %s17, 1
          %s215 = scalar_lea.sflag [#allocation3], %s214
          %s216 = sand.u32 %s109, 1
          %s217 = smul.addr %s216, 512
          %s218 = scalar_lea.vmem [#allocation7], %s217
          %s219 = smul.u32 32, %s25
          %s221 = ssub.s32 8192, 8192
          %222 = vsyncadd %s215, %s221
          %s223 = smul.addr %s219, 2
          %s224 = smul.addr %s223, 128
          %s225 = scalar_lea.hbm %s3, %s224
          %s226 = sshll.u32 %s218, 4
          %s227 = int_to_ptr.vmem [resolvable:$true] %s226
          %232 = dma.hbm_to_vmem [thread:$0]  %s225, 8192, %s227, %s215, 256, 256, 16
        $region32: #{tpu_custom_call.1} parent=23 // pred_fallthru
          _
      $region24: #{tpu_custom_call.1} parent=5 // pred_fallthru
        _
      %p233 = scmp.le.s32.totalorder 1, %s17
      %p234 = scmp.lt.s32.totalorder %s17, 5
      %p235 = pnand %p233, %p234
      %p236 = pneg %p235
      // Predicated region
      $region33: #{tpu_custom_call.1} parent=5 // pred_check
        _
      $region34: #{tpu_custom_call.1} parent=5 // pred_check_branch
        %238 = sbr.rel (%p235) target = $region36
      $region35: #{tpu_custom_call.1} parent=5 // pred_region
        %s239 = ssub.s32 %s17, 1
        %s240 = sand.u32 %s22, 1
        %s241 = scalar_lea.sflag [#allocation3], %s240
        %s242 = sand.u32 %s44, 1
        %s243 = smul.addr %s242, 256
        %s244 = scalar_lea.vmem [#allocation2], %s243
        // Predicated region
        $region37: #{tpu_custom_call.1} parent=35 // pred_check
          %p245 = pneg %p57
        $region38: #{tpu_custom_call.1} parent=35 // pred_check_branch
          %247 = sbr.rel (%p245) target = $region40
        $region39: #{tpu_custom_call.1} parent=35 // pred_region
          %248 = dma.done %s241, 4096
        $region40: #{tpu_custom_call.1} parent=35 // pred_fallthru
          _
        // Predicated region
        $region41: #{tpu_custom_call.1} parent=35 // pred_check
          %p249 = pneg %p78
        $region42: #{tpu_custom_call.1} parent=35 // pred_check_branch
          %251 = sbr.rel (%p249) target = $region44
        $region43: #{tpu_custom_call.1} parent=35 // pred_region
          %252 = dma.done [#allocation6], 2048
        $region44: #{tpu_custom_call.1} parent=35 // pred_fallthru
          _
        %s253 = sand.u32 %s22, 1
        %s254 = scalar_lea.sflag [#allocation3], %s253
        %s255 = sand.u32 %s112, 1
        %s256 = smul.addr %s255, 512
        %s257 = scalar_lea.vmem [#allocation7], %s256
        // Predicated region
        $region45: #{tpu_custom_call.1} parent=35 // pred_check
          %p258 = pneg %p125
        $region46: #{tpu_custom_call.1} parent=35 // pred_check_branch
          %260 = sbr.rel (%p258) target = $region48
        $region47: #{tpu_custom_call.1} parent=35 // pred_region
          %261 = dma.done %s254, 8192
        $region48: #{tpu_custom_call.1} parent=35 // pred_fallthru
          _
        %s262 = sand.u32 %s22, 1
        %s263 = scalar_lea.sflag [#allocation3], %s262
        %s264 = sand.u32 %s44, 1
        %s265 = smul.addr %s264, 256
        %s266 = scalar_lea.vmem [#allocation2], %s265
        %p267 = pneg %p57
        %p268 = pneg %p54
        %p269 = pneg %p78
        %p270 = pneg %p75
        %p271 = pneg %p99
        %p272 = pneg %p96
        %s273 = sand.u32 %s22, 1
        %s274 = scalar_lea.sflag [#allocation3], %s273
        %s275 = sand.u32 %s112, 1
        %s276 = smul.addr %s275, 512
        %s277 = scalar_lea.vmem [#allocation7], %s276
        %p278 = pneg %p125
        %p279 = pneg %p122
        %p280 = pneg %p153
        %p281 = pneg %p150
        %s282 = sand.u32 %s140, 1
        %s283 = scalar_lea.sflag [#allocation4], %s282
        %s284 = sand.u32 %s140, 1
        %s285 = smul.addr %s284, 512
        %s286 = scalar_lea.vmem [#allocation8], %s285
        %s287 = smul.u32 32, %s27
        %s288 = smul.u32 32, %s27
        %s289 = smul.u32 32, %s27
        %v291 = vld [vmem:[%s244] sm:$0xff]
        %v292 = vld [vmem:[%s244 + $0x8] sm:$0xff]
        %v293 = vld [vmem:[%s244 + $0x10] sm:$0xff]
        %v294 = vld [vmem:[%s244 + $0x18] sm:$0xff]
        %v295 = vld [vmem:[%s244 + $0x20] sm:$0xff]
        %v296 = vld [vmem:[%s244 + $0x28] sm:$0xff]
        %v297 = vld [vmem:[%s244 + $0x30] sm:$0xff]
        %v298 = vld [vmem:[%s244 + $0x38] sm:$0xff]
        %v299 = vld [vmem:[%s244 + $0x40] sm:$0xff]
        %v300 = vld [vmem:[%s244 + $0x48] sm:$0xff]
        %v301 = vld [vmem:[%s244 + $0x50] sm:$0xff]
        %v302 = vld [vmem:[%s244 + $0x58] sm:$0xff]
        %v303 = vld [vmem:[%s244 + $0x60] sm:$0xff]
        %v304 = vld [vmem:[%s244 + $0x68] sm:$0xff]
        %v305 = vld [vmem:[%s244 + $0x70] sm:$0xff]
        %v306 = vld [vmem:[%s244 + $0x78] sm:$0xff]
        %v307 = vld [vmem:[%s244 + $0x80] sm:$0xff]
        %v308 = vld [vmem:[%s244 + $0x88] sm:$0xff]
        %v309 = vld [vmem:[%s244 + $0x90] sm:$0xff]
        %v310 = vld [vmem:[%s244 + $0x98] sm:$0xff]
        %v311 = vld [vmem:[%s244 + $0xa0] sm:$0xff]
        %v312 = vld [vmem:[%s244 + $0xa8] sm:$0xff]
        %v313 = vld [vmem:[%s244 + $0xb0] sm:$0xff]
        %v314 = vld [vmem:[%s244 + $0xb8] sm:$0xff]
        %v315 = vld [vmem:[%s244 + $0xc0] sm:$0xff]
        %v316 = vld [vmem:[%s244 + $0xc8] sm:$0xff]
        %v317 = vld [vmem:[%s244 + $0xd0] sm:$0xff]
        %v318 = vld [vmem:[%s244 + $0xd8] sm:$0xff]
        %v319 = vld [vmem:[%s244 + $0xe0] sm:$0xff]
        %v320 = vld [vmem:[%s244 + $0xe8] sm:$0xff]
        %v321 = vld [vmem:[%s244 + $0xf0] sm:$0xff]
        %v322 = vld [vmem:[%s244 + $0xf8] sm:$0xff]
        %v323 = vpack.c.bf16 %v292, %v291
        %v324 = vpack.c.bf16 %v294, %v293
        %v325 = vpack.c.bf16 %v296, %v295
        %v326 = vpack.c.bf16 %v298, %v297
        %v327 = vpack.c.bf16 %v300, %v299
        %v328 = vpack.c.bf16 %v302, %v301
        %v329 = vpack.c.bf16 %v304, %v303
        %v330 = vpack.c.bf16 %v306, %v305
        %v331 = vpack.c.bf16 %v308, %v307
        %v332 = vpack.c.bf16 %v310, %v309
        %v333 = vpack.c.bf16 %v312, %v311
        %v334 = vpack.c.bf16 %v314, %v313
        %v335 = vpack.c.bf16 %v316, %v315
        %v336 = vpack.c.bf16 %v318, %v317
        %v337 = vpack.c.bf16 %v320, %v319
        %v338 = vpack.c.bf16 %v322, %v321
        %v339 = vld [vmem:[#allocation5] sm:$0xff]
        %v340 = vld [vmem:[#allocation5 + $0x8] sm:$0xff]
        %v341 = vld [vmem:[#allocation5 + $0x10] sm:$0xff]
        %v342 = vld [vmem:[#allocation5 + $0x18] sm:$0xff]
        %v343 = vld [vmem:[#allocation5 + $0x20] sm:$0xff]
        %v344 = vld [vmem:[#allocation5 + $0x28] sm:$0xff]
        %v345 = vld [vmem:[#allocation5 + $0x30] sm:$0xff]
        %v346 = vld [vmem:[#allocation5 + $0x38] sm:$0xff]
        %v347 = vld [vmem:[#allocation5 + $0x40] sm:$0xff]
        %v348 = vld [vmem:[#allocation5 + $0x48] sm:$0xff]
        %v349 = vld [vmem:[#allocation5 + $0x50] sm:$0xff]
        %v350 = vld [vmem:[#allocation5 + $0x58] sm:$0xff]
        %v351 = vld [vmem:[#allocation5 + $0x60] sm:$0xff]
        %v352 = vld [vmem:[#allocation5 + $0x68] sm:$0xff]
        %v353 = vld [vmem:[#allocation5 + $0x70] sm:$0xff]
        %v354 = vld [vmem:[#allocation5 + $0x78] sm:$0xff]
        %v355 = vld [vmem:[%s2] sm:$0x3]
        %v357 = vlaneseq
        %v358 = vshrl.u32 %v357, 7
        %v359 = vsub.s32 0, %v358
        %v360 = vrot.slane %v355, %v359
        %v361 = vlaneseq
        %v362 = vshrl.u32 %v361, 7
        %v363 = vsub.s32 1, %v362
        %v364 = vrot.slane %v355, %v363
        %v383 = vunpack.c.l.b16 %v339
        %v384 = vunpack.c.h.b16 %v339
        %v385 = vunpack.c.l.b16 %v340
        %v386 = vunpack.c.h.b16 %v340
        %v387 = vunpack.c.l.b16 %v341
        %v388 = vunpack.c.h.b16 %v341
        %v389 = vunpack.c.l.b16 %v342
        %v390 = vunpack.c.h.b16 %v342
        %v391 = vunpack.c.l.b16 %v343
        %v392 = vunpack.c.h.b16 %v343
        %v393 = vunpack.c.l.b16 %v344
        %v394 = vunpack.c.h.b16 %v344
        %v395 = vunpack.c.l.b16 %v345
        %v396 = vunpack.c.h.b16 %v345
        %v397 = vunpack.c.l.b16 %v346
        %v398 = vunpack.c.h.b16 %v346
        %v399 = vunpack.c.l.b16 %v347
        %v400 = vunpack.c.h.b16 %v347
        %v401 = vunpack.c.l.b16 %v348
        %v402 = vunpack.c.h.b16 %v348
        %v403 = vunpack.c.l.b16 %v349
        %v404 = vunpack.c.h.b16 %v349
        %v405 = vunpack.c.l.b16 %v350
        %v406 = vunpack.c.h.b16 %v350
        %v407 = vunpack.c.l.b16 %v351
        %v408 = vunpack.c.h.b16 %v351
        %v409 = vunpack.c.l.b16 %v352
        %v410 = vunpack.c.h.b16 %v352
        %v411 = vunpack.c.l.b16 %v353
        %v412 = vunpack.c.h.b16 %v353
        %v413 = vunpack.c.l.b16 %v354
        %v414 = vunpack.c.h.b16 %v354
        %v415 = vpack.c.b16 %v385, %v383
        %v416 = vpack.c.b16 %v386, %v384
        %v417 = vpack.c.b16 %v389, %v387
        %v418 = vpack.c.b16 %v390, %v388
        %v419 = vpack.c.b16 %v393, %v391
        %v420 = vpack.c.b16 %v394, %v392
        %v421 = vpack.c.b16 %v397, %v395
        %v422 = vpack.c.b16 %v398, %v396
        %v423 = vpack.c.b16 %v401, %v399
        %v424 = vpack.c.b16 %v402, %v400
        %v425 = vpack.c.b16 %v405, %v403
        %v426 = vpack.c.b16 %v406, %v404
        %v427 = vpack.c.b16 %v409, %v407
        %v428 = vpack.c.b16 %v410, %v408
        %v429 = vpack.c.b16 %v413, %v411
        %v430 = vpack.c.b16 %v414, %v412
        %447 = vmatprep.subr.bf16.mxu0 %v430
        %448 = vmatpush1.bf16.msra.mxu0 %v429
        %449 = vmatprep.subr.bf16.mxu0 %v428
        %450 = vmatpush1.bf16.msra.mxu0 %v427
        %451 = vmatprep.subr.bf16.mxu0 %v426
        %452 = vmatpush1.bf16.msra.mxu0 %v425
        %453 = vmatprep.subr.bf16.mxu0 %v424
        %454 = vmatpush1.bf16.msra.mxu0 %v423
        %455 = vmatprep.subr.bf16.mxu0 %v422
        %456 = vmatpush1.bf16.msra.mxu0 %v421
        %457 = vmatprep.subr.bf16.mxu0 %v420
        %458 = vmatpush1.bf16.msra.mxu0 %v419
        %459 = vmatprep.subr.bf16.mxu0 %v418
        %460 = vmatpush1.bf16.msra.mxu0 %v417
        %461 = vmatprep.subr.bf16.mxu0 %v416
        %462 = vmatpush1.bf16.msra.mxu0 %v415
        %463 = vmatprep.subr.bf16.mxu0 0
        %464 = vmatpush2.bf16.msra.mxu0 0
        %465 = vmatprep.subr.bf16.mxu0 0
        %466 = vmatpush2.bf16.msra.mxu0 0
        %467 = vmatprep.subr.bf16.mxu0 0
        %468 = vmatpush2.bf16.msra.mxu0 0
        %469 = vmatprep.subr.bf16.mxu0 0
        %470 = vmatpush2.bf16.msra.mxu0 0
        %471 = vmatprep.subr.bf16.mxu0 0
        %472 = vmatpush2.bf16.msra.mxu0 0
        %473 = vmatprep.subr.bf16.mxu0 0
        %474 = vmatpush2.bf16.msra.mxu0 0
        %475 = vmatprep.subr.bf16.mxu0 0
        %476 = vmatpush2.bf16.msra.mxu0 0
        %477 = vmatprep.subr.bf16.mxu0 0
        %478 = vmatpush2.bf16.msra.mxu0 0
        %479 = vmatprep.mubr.bf16.mxu0 0
        %480 = vmatmul.mubr.bf16.gmra.mxu0 %v323
        %v481 = vpop.f32.mrf.mxu0
        %v482 = vadd.f32 %v360, %v481
        %v483 = vpop.f32.mrf.mxu0
        %v484 = vadd.f32 %v364, %v483
        %v485 = vpop.f32.mrf.mxu0
        %v486 = vadd.f32 %v360, %v485
        %v487 = vpop.f32.mrf.mxu0
        %v488 = vadd.f32 %v364, %v487
        %489 = vmatprep.mubr.bf16.mxu0 0
        %490 = vmatmul.mubr.bf16.gmra.mxu0 %v324
        %v491 = vpop.f32.mrf.mxu0
        %v492 = vadd.f32 %v360, %v491
        %v493 = vpop.f32.mrf.mxu0
        %v494 = vadd.f32 %v364, %v493
        %v495 = vpop.f32.mrf.mxu0
        %v496 = vadd.f32 %v360, %v495
        %v497 = vpop.f32.mrf.mxu0
        %v498 = vadd.f32 %v364, %v497
        %499 = vmatprep.mubr.bf16.mxu0 0
        %500 = vmatmul.mubr.bf16.gmra.mxu0 %v325
        %v501 = vpop.f32.mrf.mxu0
        %v502 = vadd.f32 %v360, %v501
        %v503 = vpop.f32.mrf.mxu0
        %v504 = vadd.f32 %v364, %v503
        %v505 = vpop.f32.mrf.mxu0
        %v506 = vadd.f32 %v360, %v505
        %v507 = vpop.f32.mrf.mxu0
        %v508 = vadd.f32 %v364, %v507
        %509 = vmatprep.mubr.bf16.mxu0 0
        %510 = vmatmul.mubr.bf16.gmra.mxu0 %v326
        %v511 = vpop.f32.mrf.mxu0
        %v512 = vadd.f32 %v360, %v511
        %v513 = vpop.f32.mrf.mxu0
        %v514 = vadd.f32 %v364, %v513
        %v515 = vpop.f32.mrf.mxu0
        %v516 = vadd.f32 %v360, %v515
        %v517 = vpop.f32.mrf.mxu0
        %v518 = vadd.f32 %v364, %v517
        %519 = vmatprep.mubr.bf16.mxu0 0
        %520 = vmatmul.mubr.bf16.gmra.mxu0 %v327
        %v521 = vpop.f32.mrf.mxu0
        %v522 = vadd.f32 %v360, %v521
        %v523 = vpop.f32.mrf.mxu0
        %v524 = vadd.f32 %v364, %v523
        %v525 = vpop.f32.mrf.mxu0
        %v526 = vadd.f32 %v360, %v525
        %v527 = vpop.f32.mrf.mxu0
        %v528 = vadd.f32 %v364, %v527
        %529 = vmatprep.mubr.bf16.mxu0 0
        %530 = vmatmul.mubr.bf16.gmra.mxu0 %v328
        %v531 = vpop.f32.mrf.mxu0
        %v532 = vadd.f32 %v360, %v531
        %v533 = vpop.f32.mrf.mxu0
        %v534 = vadd.f32 %v364, %v533
        %v535 = vpop.f32.mrf.mxu0
        %v536 = vadd.f32 %v360, %v535
        %v537 = vpop.f32.mrf.mxu0
        %v538 = vadd.f32 %v364, %v537
        %539 = vmatprep.mubr.bf16.mxu0 0
        %540 = vmatmul.mubr.bf16.gmra.mxu0 %v329
        %v541 = vpop.f32.mrf.mxu0
        %v542 = vadd.f32 %v360, %v541
        %v543 = vpop.f32.mrf.mxu0
        %v544 = vadd.f32 %v364, %v543
        %v545 = vpop.f32.mrf.mxu0
        %v546 = vadd.f32 %v360, %v545
        %v547 = vpop.f32.mrf.mxu0
        %v548 = vadd.f32 %v364, %v547
        %549 = vmatprep.mubr.bf16.mxu0 0
        %550 = vmatmul.mubr.bf16.gmra.mxu0 %v330
        %v551 = vpop.f32.mrf.mxu0
        %v552 = vadd.f32 %v360, %v551
        %v553 = vpop.f32.mrf.mxu0
        %v554 = vadd.f32 %v364, %v553
        %v555 = vpop.f32.mrf.mxu0
        %v556 = vadd.f32 %v360, %v555
        %v557 = vpop.f32.mrf.mxu0
        %v558 = vadd.f32 %v364, %v557
        %559 = vmatprep.mubr.bf16.mxu0 0
        %560 = vmatmul.mubr.bf16.gmra.mxu0 %v331
        %v561 = vpop.f32.mrf.mxu0
        %v562 = vadd.f32 %v360, %v561
        %v563 = vpop.f32.mrf.mxu0
        %v564 = vadd.f32 %v364, %v563
        %v565 = vpop.f32.mrf.mxu0
        %v566 = vadd.f32 %v360, %v565
        %v567 = vpop.f32.mrf.mxu0
        %v568 = vadd.f32 %v364, %v567
        %569 = vmatprep.mubr.bf16.mxu0 0
        %570 = vmatmul.mubr.bf16.gmra.mxu0 %v332
        %v571 = vpop.f32.mrf.mxu0
        %v572 = vadd.f32 %v360, %v571
        %v573 = vpop.f32.mrf.mxu0
        %v574 = vadd.f32 %v364, %v573
        %v575 = vpop.f32.mrf.mxu0
        %v576 = vadd.f32 %v360, %v575
        %v577 = vpop.f32.mrf.mxu0
        %v578 = vadd.f32 %v364, %v577
        %579 = vmatprep.mubr.bf16.mxu0 0
        %580 = vmatmul.mubr.bf16.gmra.mxu0 %v333
        %v581 = vpop.f32.mrf.mxu0
        %v582 = vadd.f32 %v360, %v581
        %v583 = vpop.f32.mrf.mxu0
        %v584 = vadd.f32 %v364, %v583
        %v585 = vpop.f32.mrf.mxu0
        %v586 = vadd.f32 %v360, %v585
        %v587 = vpop.f32.mrf.mxu0
        %v588 = vadd.f32 %v364, %v587
        %589 = vmatprep.mubr.bf16.mxu0 0
        %590 = vmatmul.mubr.bf16.gmra.mxu0 %v334
        %v591 = vpop.f32.mrf.mxu0
        %v592 = vadd.f32 %v360, %v591
        %v593 = vpop.f32.mrf.mxu0
        %v594 = vadd.f32 %v364, %v593
        %v595 = vpop.f32.mrf.mxu0
        %v596 = vadd.f32 %v360, %v595
        %v597 = vpop.f32.mrf.mxu0
        %v598 = vadd.f32 %v364, %v597
        %599 = vmatprep.mubr.bf16.mxu0 0
        %600 = vmatmul.mubr.bf16.gmra.mxu0 %v335
        %v601 = vpop.f32.mrf.mxu0
        %v602 = vadd.f32 %v360, %v601
        %v603 = vpop.f32.mrf.mxu0
        %v604 = vadd.f32 %v364, %v603
        %v605 = vpop.f32.mrf.mxu0
        %v606 = vadd.f32 %v360, %v605
        %v607 = vpop.f32.mrf.mxu0
        %v608 = vadd.f32 %v364, %v607
        %609 = vmatprep.mubr.bf16.mxu0 0
        %610 = vmatmul.mubr.bf16.gmra.mxu0 %v336
        %v611 = vpop.f32.mrf.mxu0
        %v612 = vadd.f32 %v360, %v611
        %v613 = vpop.f32.mrf.mxu0
        %v614 = vadd.f32 %v364, %v613
        %v615 = vpop.f32.mrf.mxu0
        %v616 = vadd.f32 %v360, %v615
        %v617 = vpop.f32.mrf.mxu0
        %v618 = vadd.f32 %v364, %v617
        %619 = vmatprep.mubr.bf16.mxu0 0
        %620 = vmatmul.mubr.bf16.gmra.mxu0 %v337
        %v621 = vpop.f32.mrf.mxu0
        %v622 = vadd.f32 %v360, %v621
        %v623 = vpop.f32.mrf.mxu0
        %v624 = vadd.f32 %v364, %v623
        %v625 = vpop.f32.mrf.mxu0
        %v626 = vadd.f32 %v360, %v625
        %v627 = vpop.f32.mrf.mxu0
        %v628 = vadd.f32 %v364, %v627
        %629 = vmatprep.mubr.bf16.mxu0 0
        %630 = vmatmul.mubr.bf16.gmra.mxu0 %v338
        %v631 = vpop.f32.mrf.mxu0
        %v632 = vadd.f32 %v360, %v631
        %v633 = vpop.f32.mrf.mxu0
        %v634 = vadd.f32 %v364, %v633
        %v635 = vpop.f32.mrf.mxu0
        %v636 = vadd.f32 %v360, %v635
        %v637 = vpop.f32.mrf.mxu0
        %v638 = vadd.f32 %v364, %v637
        %639 = vdwg.mxu0
        %v640 = vld [vmem:[%s257] sm:$0xff]
        %v641 = vld [vmem:[%s257 + $0x8] sm:$0xff]
        %v642 = vld [vmem:[%s257 + $0x10] sm:$0xff]
        %v643 = vld [vmem:[%s257 + $0x18] sm:$0xff]
        %v644 = vld [vmem:[%s257 + $0x20] sm:$0xff]
        %v645 = vld [vmem:[%s257 + $0x28] sm:$0xff]
        %v646 = vld [vmem:[%s257 + $0x30] sm:$0xff]
        %v647 = vld [vmem:[%s257 + $0x38] sm:$0xff]
        %v648 = vld [vmem:[%s257 + $0x40] sm:$0xff]
        %v649 = vld [vmem:[%s257 + $0x48] sm:$0xff]
        %v650 = vld [vmem:[%s257 + $0x50] sm:$0xff]
        %v651 = vld [vmem:[%s257 + $0x58] sm:$0xff]
        %v652 = vld [vmem:[%s257 + $0x60] sm:$0xff]
        %v653 = vld [vmem:[%s257 + $0x68] sm:$0xff]
        %v654 = vld [vmem:[%s257 + $0x70] sm:$0xff]
        %v655 = vld [vmem:[%s257 + $0x78] sm:$0xff]
        %v656 = vld [vmem:[%s257 + $0x80] sm:$0xff]
        %v657 = vld [vmem:[%s257 + $0x88] sm:$0xff]
        %v658 = vld [vmem:[%s257 + $0x90] sm:$0xff]
        %v659 = vld [vmem:[%s257 + $0x98] sm:$0xff]
        %v660 = vld [vmem:[%s257 + $0xa0] sm:$0xff]
        %v661 = vld [vmem:[%s257 + $0xa8] sm:$0xff]
        %v662 = vld [vmem:[%s257 + $0xb0] sm:$0xff]
        %v663 = vld [vmem:[%s257 + $0xb8] sm:$0xff]
        %v664 = vld [vmem:[%s257 + $0xc0] sm:$0xff]
        %v665 = vld [vmem:[%s257 + $0xc8] sm:$0xff]
        %v666 = vld [vmem:[%s257 + $0xd0] sm:$0xff]
        %v667 = vld [vmem:[%s257 + $0xd8] sm:$0xff]
        %v668 = vld [vmem:[%s257 + $0xe0] sm:$0xff]
        %v669 = vld [vmem:[%s257 + $0xe8] sm:$0xff]
        %v670 = vld [vmem:[%s257 + $0xf0] sm:$0xff]
        %v671 = vld [vmem:[%s257 + $0xf8] sm:$0xff]
        %v672 = vld [vmem:[%s257 + $0x100] sm:$0xff]
        %v673 = vld [vmem:[%s257 + $0x108] sm:$0xff]
        %v674 = vld [vmem:[%s257 + $0x110] sm:$0xff]
        %v675 = vld [vmem:[%s257 + $0x118] sm:$0xff]
        %v676 = vld [vmem:[%s257 + $0x120] sm:$0xff]
        %v677 = vld [vmem:[%s257 + $0x128] sm:$0xff]
        %v678 = vld [vmem:[%s257 + $0x130] sm:$0xff]
        %v679 = vld [vmem:[%s257 + $0x138] sm:$0xff]
        %v680 = vld [vmem:[%s257 + $0x140] sm:$0xff]
        %v681 = vld [vmem:[%s257 + $0x148] sm:$0xff]
        %v682 = vld [vmem:[%s257 + $0x150] sm:$0xff]
        %v683 = vld [vmem:[%s257 + $0x158] sm:$0xff]
        %v684 = vld [vmem:[%s257 + $0x160] sm:$0xff]
        %v685 = vld [vmem:[%s257 + $0x168] sm:$0xff]
        %v686 = vld [vmem:[%s257 + $0x170] sm:$0xff]
        %v687 = vld [vmem:[%s257 + $0x178] sm:$0xff]
        %v688 = vld [vmem:[%s257 + $0x180] sm:$0xff]
        %v689 = vld [vmem:[%s257 + $0x188] sm:$0xff]
        %v690 = vld [vmem:[%s257 + $0x190] sm:$0xff]
        %v691 = vld [vmem:[%s257 + $0x198] sm:$0xff]
        %v692 = vld [vmem:[%s257 + $0x1a0] sm:$0xff]
        %v693 = vld [vmem:[%s257 + $0x1a8] sm:$0xff]
        %v694 = vld [vmem:[%s257 + $0x1b0] sm:$0xff]
        %v695 = vld [vmem:[%s257 + $0x1b8] sm:$0xff]
        %v696 = vld [vmem:[%s257 + $0x1c0] sm:$0xff]
        %v697 = vld [vmem:[%s257 + $0x1c8] sm:$0xff]
        %v698 = vld [vmem:[%s257 + $0x1d0] sm:$0xff]
        %v699 = vld [vmem:[%s257 + $0x1d8] sm:$0xff]
        %v700 = vld [vmem:[%s257 + $0x1e0] sm:$0xff]
        %v701 = vld [vmem:[%s257 + $0x1e8] sm:$0xff]
        %v702 = vld [vmem:[%s257 + $0x1f0] sm:$0xff]
        %v703 = vld [vmem:[%s257 + $0x1f8] sm:$0xff]
        %v704 = vadd.f32 %v482, %v640
        %v705 = vadd.f32 %v484, %v641
        %v706 = vadd.f32 %v486, %v642
        %v707 = vadd.f32 %v488, %v643
        %v708 = vadd.f32 %v492, %v644
        %v709 = vadd.f32 %v494, %v645
        %v710 = vadd.f32 %v496, %v646
        %v711 = vadd.f32 %v498, %v647
        %v712 = vadd.f32 %v502, %v648
        %v713 = vadd.f32 %v504, %v649
        %v714 = vadd.f32 %v506, %v650
        %v715 = vadd.f32 %v508, %v651
        %v716 = vadd.f32 %v512, %v652
        %v717 = vadd.f32 %v514, %v653
        %v718 = vadd.f32 %v516, %v654
        %v719 = vadd.f32 %v518, %v655
        %v720 = vadd.f32 %v522, %v656
        %v721 = vadd.f32 %v524, %v657
        %v722 = vadd.f32 %v526, %v658
        %v723 = vadd.f32 %v528, %v659
        %v724 = vadd.f32 %v532, %v660
        %v725 = vadd.f32 %v534, %v661
        %v726 = vadd.f32 %v536, %v662
        %v727 = vadd.f32 %v538, %v663
        %v728 = vadd.f32 %v542, %v664
        %v729 = vadd.f32 %v544, %v665
        %v730 = vadd.f32 %v546, %v666
        %v731 = vadd.f32 %v548, %v667
        %v732 = vadd.f32 %v552, %v668
        %v733 = vadd.f32 %v554, %v669
        %v734 = vadd.f32 %v556, %v670
        %v735 = vadd.f32 %v558, %v671
        %v736 = vadd.f32 %v562, %v672
        %v737 = vadd.f32 %v564, %v673
        %v738 = vadd.f32 %v566, %v674
        %v739 = vadd.f32 %v568, %v675
        %v740 = vadd.f32 %v572, %v676
        %v741 = vadd.f32 %v574, %v677
        %v742 = vadd.f32 %v576, %v678
        %v743 = vadd.f32 %v578, %v679
        %v744 = vadd.f32 %v582, %v680
        %v745 = vadd.f32 %v584, %v681
        %v746 = vadd.f32 %v586, %v682
        %v747 = vadd.f32 %v588, %v683
        %v748 = vadd.f32 %v592, %v684
        %v749 = vadd.f32 %v594, %v685
        %v750 = vadd.f32 %v596, %v686
        %v751 = vadd.f32 %v598, %v687
        %v752 = vadd.f32 %v602, %v688
        %v753 = vadd.f32 %v604, %v689
        %v754 = vadd.f32 %v606, %v690
        %v755 = vadd.f32 %v608, %v691
        %v756 = vadd.f32 %v612, %v692
        %v757 = vadd.f32 %v614, %v693
        %v758 = vadd.f32 %v616, %v694
        %v759 = vadd.f32 %v618, %v695
        %v760 = vadd.f32 %v622, %v696
        %v761 = vadd.f32 %v624, %v697
        %v762 = vadd.f32 %v626, %v698
        %v763 = vadd.f32 %v628, %v699
        %v764 = vadd.f32 %v632, %v700
        %v765 = vadd.f32 %v634, %v701
        %v766 = vadd.f32 %v636, %v702
        %v767 = vadd.f32 %v638, %v703
        %768 = vst [vmem:[%s286] sm:$0xff] %v704
        %769 = vst [vmem:[%s286 + $0x8] sm:$0xff] %v705
        %770 = vst [vmem:[%s286 + $0x10] sm:$0xff] %v706
        %771 = vst [vmem:[%s286 + $0x18] sm:$0xff] %v707
        %772 = vst [vmem:[%s286 + $0x20] sm:$0xff] %v708
        %773 = vst [vmem:[%s286 + $0x28] sm:$0xff] %v709
        %774 = vst [vmem:[%s286 + $0x30] sm:$0xff] %v710
        %775 = vst [vmem:[%s286 + $0x38] sm:$0xff] %v711
        %776 = vst [vmem:[%s286 + $0x40] sm:$0xff] %v712
        %777 = vst [vmem:[%s286 + $0x48] sm:$0xff] %v713
        %778 = vst [vmem:[%s286 + $0x50] sm:$0xff] %v714
        %779 = vst [vmem:[%s286 + $0x58] sm:$0xff] %v715
        %780 = vst [vmem:[%s286 + $0x60] sm:$0xff] %v716
        %781 = vst [vmem:[%s286 + $0x68] sm:$0xff] %v717
        %782 = vst [vmem:[%s286 + $0x70] sm:$0xff] %v718
        %783 = vst [vmem:[%s286 + $0x78] sm:$0xff] %v719
        %784 = vst [vmem:[%s286 + $0x80] sm:$0xff] %v720
        %785 = vst [vmem:[%s286 + $0x88] sm:$0xff] %v721
        %786 = vst [vmem:[%s286 + $0x90] sm:$0xff] %v722
        %787 = vst [vmem:[%s286 + $0x98] sm:$0xff] %v723
        %788 = vst [vmem:[%s286 + $0xa0] sm:$0xff] %v724
        %789 = vst [vmem:[%s286 + $0xa8] sm:$0xff] %v725
        %790 = vst [vmem:[%s286 + $0xb0] sm:$0xff] %v726
        %791 = vst [vmem:[%s286 + $0xb8] sm:$0xff] %v727
        %792 = vst [vmem:[%s286 + $0xc0] sm:$0xff] %v728
        %793 = vst [vmem:[%s286 + $0xc8] sm:$0xff] %v729
        %794 = vst [vmem:[%s286 + $0xd0] sm:$0xff] %v730
        %795 = vst [vmem:[%s286 + $0xd8] sm:$0xff] %v731
        %796 = vst [vmem:[%s286 + $0xe0] sm:$0xff] %v732
        %797 = vst [vmem:[%s286 + $0xe8] sm:$0xff] %v733
        %798 = vst [vmem:[%s286 + $0xf0] sm:$0xff] %v734
        %799 = vst [vmem:[%s286 + $0xf8] sm:$0xff] %v735
        %800 = vst [vmem:[%s286 + $0x100] sm:$0xff] %v736
        %801 = vst [vmem:[%s286 + $0x108] sm:$0xff] %v737
        %802 = vst [vmem:[%s286 + $0x110] sm:$0xff] %v738
        %803 = vst [vmem:[%s286 + $0x118] sm:$0xff] %v739
        %804 = vst [vmem:[%s286 + $0x120] sm:$0xff] %v740
        %805 = vst [vmem:[%s286 + $0x128] sm:$0xff] %v741
        %806 = vst [vmem:[%s286 + $0x130] sm:$0xff] %v742
        %807 = vst [vmem:[%s286 + $0x138] sm:$0xff] %v743
        %808 = vst [vmem:[%s286 + $0x140] sm:$0xff] %v744
        %809 = vst [vmem:[%s286 + $0x148] sm:$0xff] %v745
        %810 = vst [vmem:[%s286 + $0x150] sm:$0xff] %v746
        %811 = vst [vmem:[%s286 + $0x158] sm:$0xff] %v747
        %812 = vst [vmem:[%s286 + $0x160] sm:$0xff] %v748
        %813 = vst [vmem:[%s286 + $0x168] sm:$0xff] %v749
        %814 = vst [vmem:[%s286 + $0x170] sm:$0xff] %v750
        %815 = vst [vmem:[%s286 + $0x178] sm:$0xff] %v751
        %816 = vst [vmem:[%s286 + $0x180] sm:$0xff] %v752
        %817 = vst [vmem:[%s286 + $0x188] sm:$0xff] %v753
        %818 = vst [vmem:[%s286 + $0x190] sm:$0xff] %v754
        %819 = vst [vmem:[%s286 + $0x198] sm:$0xff] %v755
        %820 = vst [vmem:[%s286 + $0x1a0] sm:$0xff] %v756
        %821 = vst [vmem:[%s286 + $0x1a8] sm:$0xff] %v757
        %822 = vst [vmem:[%s286 + $0x1b0] sm:$0xff] %v758
        %823 = vst [vmem:[%s286 + $0x1b8] sm:$0xff] %v759
        %824 = vst [vmem:[%s286 + $0x1c0] sm:$0xff] %v760
        %825 = vst [vmem:[%s286 + $0x1c8] sm:$0xff] %v761
        %826 = vst [vmem:[%s286 + $0x1d0] sm:$0xff] %v762
        %827 = vst [vmem:[%s286 + $0x1d8] sm:$0xff] %v763
        %828 = vst [vmem:[%s286 + $0x1e0] sm:$0xff] %v764
        %829 = vst [vmem:[%s286 + $0x1e8] sm:$0xff] %v765
        %830 = vst [vmem:[%s286 + $0x1f0] sm:$0xff] %v766
        %831 = vst [vmem:[%s286 + $0x1f8] sm:$0xff] %v767
        %s832 = sand.u32 %s140, 1
        %s833 = scalar_lea.sflag [#allocation4], %s832
        %s834 = sand.u32 %s140, 1
        %s835 = smul.addr %s834, 512
        %s836 = scalar_lea.vmem [#allocation8], %s835
        // Predicated region
        $region49: #{tpu_custom_call.1} parent=35 // pred_check
          %p837 = pneg %p150
        $region50: #{tpu_custom_call.1} parent=35 // pred_check_branch
          %839 = sbr.rel (%p837) target = $region52
        $region51: #{tpu_custom_call.1} parent=35 // pred_region
          %s840 = smul.u32 32, %s27
          %s842 = ssub.s32 8192, 8192
          %843 = vsyncadd %s833, %s842
          %s844 = smul.addr %s840, 2
          %s845 = smul.addr %s26, 128
          %s846 = sadd.s32 %s844, %s845
          %s847 = smul.addr %s846, 128
          %s848 = scalar_lea.hbm %s4, %s847
          %s849 = sshll.u32 %s836, 4
          %s850 = int_to_ptr.vmem [resolvable:$true] %s849
          %855 = dma.vmem_to_hbm [thread:$0]  %s850, 8192, %s848, %s833, 256, 256, 16
        $region52: #{tpu_custom_call.1} parent=35 // pred_fallthru
          _
      $region36: #{tpu_custom_call.1} parent=5 // pred_fallthru
        _
      %p856 = scmp.le.s32.totalorder 2, %s17
      // Predicated region
      $region53: #{tpu_custom_call.1} parent=5 // pred_check
        %p857 = pneg %p856
      $region54: #{tpu_custom_call.1} parent=5 // pred_check_branch
        %859 = sbr.rel (%p857) target = $region56
      $region55: #{tpu_custom_call.1} parent=5 // pred_region
        %s860 = ssub.s32 %s17, 2
        // Predicated region
        $region57: #{tpu_custom_call.1} parent=55 // pred_check
          %p861 = pneg %p156
        $region58: #{tpu_custom_call.1} parent=55 // pred_check_branch
          %863 = sbr.rel (%p861) target = $region60
        $region59: #{tpu_custom_call.1} parent=55 // pred_region
          %s864 = sand.u32 %s141, 1
          %s865 = scalar_lea.sflag [#allocation4], %s864
          %s866 = sand.u32 %s141, 1
          %s867 = smul.addr %s866, 512
          %s868 = scalar_lea.vmem [#allocation8], %s867
          %869 = dma.done %s865, 8192
        $region60: #{tpu_custom_call.1} parent=55 // pred_fallthru
          _
      $region56: #{tpu_custom_call.1} parent=5 // pred_fallthru
        _
    $region6: #{tpu_custom_call.1} parent=1 // loop_footer
      %s21 = sadd.s32 1, %s17
    $region7: #{tpu_custom_call.1} parent=1 // loop_footer_branch
      %16 = sbr.rel target = $region3
    $region8: #{tpu_custom_call.1} parent=1 // loop_exit
      _
    %870 = vsyncpa [#allocation3], 1
    %s871 = scalar_lea.sflag [#allocation3], 1
    %872 = vsyncpa %s871, 1
    %873 = vsyncpa [#allocation6], 1
    %874 = vsyncpa [#allocation4], 1
    %s875 = scalar_lea.sflag [#allocation4], 1
    %876 = vsyncpa %s875, 1

</llo_original>
